<compile_context>
chip_gen: v6e
topology: v6e:2x2x1
jax: 0.10.0
libtpu: 0.0.40
codegen_flags: <defaults>
</compile_context>

<pallas_src>
import math

import jax
import jax.numpy as jnp
from jax.experimental import pallas as pl
from jax.experimental.pallas import tpu as pltpu

LANES = 128
VMEM = pltpu.MemorySpace.VMEM


def _ln(x, g, b, eps=1e-12):
    mean = jnp.mean(x, axis=-1, keepdims=True)
    var = jnp.mean((x - mean) ** 2, axis=-1, keepdims=True)
    return (x - mean) * jax.lax.rsqrt(var + eps) * g + b


def _gelu_tanh(x):
    # TODO(synk): HF BERT default is exact erf-GELU; tanh approximation used here.
    return 0.5 * x * (1.0 + jnp.tanh(0.7978845608028654 * (x + 0.044715 * x * x * x)))


class _Slab:
    """Row allocator for packing many small tensors into one [rows, 128] slab."""

    def __init__(self):
        self.offsets = {}
        self.rows = 0

    def add(self, name, nrows, ncols):
        assert ncols <= LANES, f"{name}: {ncols} > {LANES} lanes"
        self.offsets[name] = (self.rows, nrows, ncols)
        self.rows += nrows

    def align(self, m=8):
        self.rows = ((self.rows + m - 1) // m) * m

    def padded_rows(self):
        return max(8, ((self.rows + 7) // 8) * 8)


# ---------------------------------------------------------------------------
# Model builder: slab layouts, host-side packer, fused kernel, jitted forward
# ---------------------------------------------------------------------------
def build_model(N, F, G, NHID, NOUT, B, S, H, FF):
    assert 3 * H <= LANES and FF <= LANES and NHID <= LANES and N <= LANES
    BS = B * S
    GO = 8                       # rows reserved for the graph head in the output slab
    OUT_ROWS = GO + BS
    bf16 = jnp.bfloat16
    f32 = jnp.float32

    # ---- slab layouts (shared by the host packer and the kernel) ----
    wl = _Slab()                 # bf16 matmul weights
    for i in range(3):
        wl.add(f'gcn{i}', F, F)
    wl.add('gat', F, F + 2)      # [W | W a_src | W a_dst]  (fused GAT matmul)
    wl.add('mol1', F, NHID)
    wl.add('mol2', NHID, LANES)  # zero-padded to 128 lanes -> lane-dense graph output
    wl.add('wqkv', H, 3 * H)     # [wq/sqrt(H) | wk | wv]
    wl.add('wo', H, H)
    wl.add('wff1', H, FF)
    wl.add('wff2', FF, H)

    pL = _Slab()                 # f32 biases / norm parameters
    for i in range(3):
        pL.add(f'gcn_b{i}', 1, F)
        pL.add(f'gcn_g{i}', 1, F)
        pL.add(f'gcn_be{i}', 1, F)
    pL.add('gat_b', 1, F)
    pL.add('bna_g', 1, F)
    pL.add('bna_b', 1, F)
    pL.add('mol1_b', 1, NHID)
    pL.add('mol2_b', 1, LANES)
    pL.add('eln_g', 1, H)
    pL.add('eln_b', 1, H)
    pL.add('bqkv', 1, 3 * H)
    pL.add('bo', 1, H)
    pL.add('ln1_g', 1, H)
    pL.add('ln1_b', 1, H)
    pL.add('bff1', 1, FF)
    pL.add('bff2', 1, H)
    pL.add('ln2_g', 1, H)
    pL.add('ln2_b', 1, H)

    aL = _Slab()                 # f32 per-call activations / graph structure
    aL.add('xag', N, 3 * F)      # [x | adj_norm | gat_mask]
    aL.align()
    aL.add('pool', G, N)
    aL.add('key', 1, BS)         # key code: sequence id for valid keys, -1 for pads
    aL.align()
    aL.add('emb', BS, H + 1)     # [token embeddings | sequence-id column]

    r_xag = aL.offsets['xag'][0]
    r_pool = aL.offsets['pool'][0]
    r_key = aL.offsets['key'][0]
    r_emb = aL.offsets['emb'][0]

    # ------------------------- host-side parameter packer -------------------------
    def pack_params(params):
        W = jnp.zeros((wl.padded_rows(), LANES), f32)

        def putw(Wa, name, mat):
            r, _, _ = wl.offsets[name]
            return Wa.at[r:r + mat.shape[0], 0:mat.shape[1]].set(mat.astype(f32))

        for i in range(3):
            W = putw(W, f'gcn{i}', params['gcn_w'][i])
        gat_ext = jnp.concatenate(
            [params['gat_w'], params['gat_w'] @ params['gat_a'].T], axis=1)
        W = putw(W, 'gat', gat_ext)
        W = putw(W, 'mol1', params['mol1_w'])
        W = putw(W, 'mol2', params['mol2_w'])          # cols NOUT..127 stay zero
        scale = 1.0 / math.sqrt(H)                     # fold softmax scale into q
        W = putw(W, 'wqkv', jnp.concatenate(
            [params['wq'] * scale, params['wk'], params['wv']], axis=1))
        W = putw(W, 'wo', params['wo'])
        W = putw(W, 'wff1', params['w_ff1'])
        W = putw(W, 'wff2', params['w_ff2'])

        P = jnp.zeros((pL.padded_rows(), LANES), f32)

        def putp(Pa, name, vec):
            r, _, _ = pL.offsets[name]
            v = vec.reshape(1, -1).astype(f32)
            return Pa.at[r:r + 1, 0:v.shape[1]].set(v)

        for i in range(3):
            P = putp(P, f'gcn_b{i}', params['gcn_b'][i])
            P = putp(P, f'gcn_g{i}', params['gcn_g'][i])
            P = putp(P, f'gcn_be{i}', params['gcn_be'][i])
        P = putp(P, 'gat_b', params['gat_b'])
        P = putp(P, 'bna_g', params['bna_g'])
        P = putp(P, 'bna_b', params['bna_b'])
        P = putp(P, 'mol1_b', params['mol1_b'])
        P = putp(P, 'mol2_b', params['mol2_b'])
        P = putp(P, 'eln_g', params['emb_ln_g'])
        P = putp(P, 'eln_b', params['emb_ln_b'])
        P = putp(P, 'bqkv', jnp.concatenate(
            [params['bq'] * scale, params['bk'], params['bv']], axis=1))
        P = putp(P, 'bo', params['bo'])
        P = putp(P, 'ln1_g', params['ln1_g'])
        P = putp(P, 'ln1_b', params['ln1_b'])
        P = putp(P, 'bff1', params['b_ff1'])
        P = putp(P, 'bff2', params['b_ff2'])
        P = putp(P, 'ln2_g', params['ln2_g'])
        P = putp(P, 'ln2_b', params['ln2_b'])
        return W.astype(bf16), P

    # --------------------------- the single fused kernel ---------------------------
    def kernel(w_ref, p_ref, a_ref, out_ref):
        def wv(name):
            r, nr, nc = wl.offsets[name]
            return w_ref[r:r + nr, 0:nc]

        def pv(name):
            r, _, nc = pL.offsets[name]
            return p_ref[r:r + 1, 0:nc]

        out_ref[...] = jnp.zeros_like(out_ref)

        # ============================= graph encoder =============================
        x = a_ref[r_xag:r_xag + N, 0:F]
        adj = a_ref[r_xag:r_xag + N, F:2 * F].astype(bf16)       # normalized adjacency
        gmsk = a_ref[r_xag:r_xag + N, 2 * F:3 * F]               # edges + self-loops
        pool = a_ref[r_pool:r_pool + G, 0:N]                     # mean-pool matrix (f32)

        ones_row = jnp.ones((1, N), f32)

        def _bn(z, g, b, eps=1e-5):
            # Training-mode BatchNorm; both batch statistics from one elementwise
            # pass, sums done as tiny f32 matmuls on the otherwise-idle MXU.
            mean = jnp.dot(ones_row, z, preferred_element_type=f32) * (1.0 / N)
            mean_sq = jnp.dot(ones_row, z * z, preferred_element_type=f32) * (1.0 / N)
            var = jnp.maximum(mean_sq - mean * mean, 0.0)
            return (z - mean) * jax.lax.rsqrt(var + eps) * g + b

        # 3x (GCNConv -> BatchNorm(train) -> ReLU -> residual)
        h = x
        for i in range(3):
            xw = jnp.dot(h.astype(bf16), wv(f'gcn{i}'), preferred_element_type=f32)
            z = jnp.dot(adj, xw.astype(bf16), preferred_element_type=f32) + pv(f'gcn_b{i}')
            z = _bn(z, pv(f'gcn_g{i}'), pv(f'gcn_be{i}'))
            h = jnp.maximum(z, 0.0) + h

        # GATConv (1 head): fused matmul gives [Wh | a_src.Wh | a_dst.Wh]
        hwa = jnp.dot(h.astype(bf16), wv('gat'), preferred_element_type=f32)
        hw = hwa[:, 0:F]
        s_src = hwa[:, F:F + 1]                                  # per-source-node term
        d_dst = hwa[:, F + 1:F + 2]                              # per-target-node term
        e = d_dst + jnp.transpose(s_src)                         # e[i, j] = d_i + s_j
        e = jnp.where(e > 0, e, 0.2 * e)                         # LeakyReLU(0.2)
        e = jnp.where(gmsk > 0, e, -1e30)
        e = e - jnp.max(e, axis=1, keepdims=True)
        pe = jnp.exp(e)                                          # masked logits underflow to 0
        alpha = pe * pl.reciprocal(jnp.sum(pe, axis=1, keepdims=True), approx=True)
        att = jnp.dot(alpha.astype(bf16), hw.astype(bf16),
                      preferred_element_type=f32) + pv('gat_b')
        att = _bn(att, pv('bna_g'), pv('bna_b'))
        h = jnp.maximum(att, 0.0) + h

        # global_mean_pool (f32 -> exact 1/count) + 2-layer MLP head
        pooled = jnp.dot(pool, h, preferred_element_type=f32)
        m1 = jnp.maximum(
            jnp.dot(pooled.astype(bf16), wv('mol1'), preferred_element_type=f32)
            + pv('mol1_b'), 0.0)
        gout = jnp.dot(m1.astype(bf16), wv('mol2'),
                       preferred_element_type=f32) + pv('mol2_b')    # [G, 128] lane-dense
        out_ref[0:G, :] = gout

        # ================= text encoder (single BERT-style layer, 2D) =================
        emb = _ln(a_ref[r_emb:r_emb + BS, 0:H], pv('eln_g'), pv('eln_b'))
        qkv = jnp.dot(emb.astype(bf16), wv('wqkv'),
                      preferred_element_type=f32) + pv('bqkv')        # q pre-scaled 1/sqrt(H)
        q = qkv[:, 0:H].astype(bf16)
        k = qkv[:, H:2 * H].astype(bf16)
        v = qkv[:, 2 * H:3 * H].astype(bf16)
        scores = jnp.einsum('qd,kd->qk', q, k, preferred_element_type=f32)
        # Block-diagonal + padding mask built in-kernel: one row + one column compare.
        seq_col = a_ref[r_emb:r_emb + BS, H:H + 1]                    # [BS, 1] sequence id
        key_row = a_ref[r_key:r_key + 1, 0:BS]                        # [1, BS] seq id or -1
        scores = jnp.where(seq_col == key_row, scores, -1e30)
        scores = scores - jnp.max(scores, axis=-1, keepdims=True)
        pr = jnp.exp(scores)
        attn = pr * pl.reciprocal(jnp.sum(pr, axis=-1, keepdims=True), approx=True)
        ctx = jnp.dot(attn.astype(bf16), v, preferred_element_type=f32)
        attn_out = jnp.dot(ctx.astype(bf16), wv('wo'),
                           preferred_element_type=f32) + pv('bo')
        h1 = _ln(emb + attn_out, pv('ln1_g'), pv('ln1_b'))
        ff = _gelu_tanh(jnp.dot(h1.astype(bf16), wv('wff1'),
                                preferred_element_type=f32) + pv('bff1'))
        ff = jnp.dot(ff.astype(bf16), wv('wff2'),
                     preferred_element_type=f32) + pv('bff2')
        out_ref[GO:GO + BS, 0:H] = _ln(h1 + ff, pv('ln2_g'), pv('ln2_b'))

    fused = pl.pallas_call(
        kernel,
        out_shape=jax.ShapeDtypeStruct((OUT_ROWS, LANES), f32),
        in_specs=[pl.BlockSpec(memory_space=VMEM)] * 3,
        out_specs=pl.BlockSpec(memory_space=VMEM),
    )

    # ------------------------------- jitted forward -------------------------------
    @jax.jit
    def forward(w_slab, p_slab, embed_params, x, adj_norm, gat_mask, pool,
                input_ids, attention_mask):
        # Token/position/type embedding gather stays outside the kernel.
        emb = (jnp.take(embed_params['word_emb'], input_ids, axis=0)
               + embed_params['pos_emb'][None, :S, :]
               + embed_params['type_emb'][None, :, :]).reshape(BS, H)
        tok_seq = jnp.repeat(jnp.arange(B, dtype=f32), S)
        key_code = jnp.where(attention_mask.reshape(BS) > 0, tok_seq, -1.0)

        A = jnp.zeros((aL.padded_rows(), LANES), f32)
        A = A.at[r_xag:r_xag + N, 0:F].set(x)
        A = A.at[r_xag:r_xag + N, F:2 * F].set(adj_norm)
        A = A.at[r_xag:r_xag + N, 2 * F:3 * F].set(gat_mask)
        A = A.at[r_pool:r_pool + G, 0:N].set(pool)
        A = A.at[r_key, 0:BS].set(key_code)
        A = A.at[r_emb:r_emb + BS, 0:H].set(emb)
        A = A.at[r_emb:r_emb + BS, H].set(tok_seq)

        out = fused(w_slab, p_slab, A)
        graph_encoded = out[0:G, 0:NOUT]
        text_encoded = out[GO:GO + BS, 0:H].reshape(B, S, H)[:, 0, :]   # CLS tokens
        return graph_encoded, text_encoded

    return pack_params, forward


# ---------------------------------------------------------------------------
# Parameter init & graph-structure glue (host side)
# ---------------------------------------------------------------------------
def glorot(key, shape):
    fan_in, fan_out = shape[0], shape[-1]
    lim = math.sqrt(6.0 / (fan_in + fan_out))
    return jax.random.uniform(key, shape, minval=-lim, maxval=lim, dtype=jnp.float32)


def init_params(key, nnf, ghc, nhid, nout, vocab, hdim, ffdim, max_pos):
    assert nnf == ghc, "residual '+ x' in conv1 requires num_node_features == graph_hidden_channels"
    keys = jax.random.split(key, 32)
    it = iter(keys)
    p = {}
    p['gcn_w'] = jnp.stack([glorot(next(it), (ghc, ghc)) for _ in range(3)])
    p['gcn_b'] = jnp.zeros((3, 1, ghc), jnp.float32)
    p['gcn_g'] = jnp.ones((3, 1, ghc), jnp.float32)
    p['gcn_be'] = jnp.zeros((3, 1, ghc), jnp.float32)
    p['gat_w'] = glorot(next(it), (ghc, ghc))
    p['gat_a'] = glorot(next(it), (2, ghc))          # rows: (a_src, a_dst)
    p['gat_b'] = jnp.zeros((1, ghc), jnp.float32)
    p['bna_g'] = jnp.ones((1, ghc), jnp.float32)
    p['bna_b'] = jnp.zeros((1, ghc), jnp.float32)
    p['mol1_w'] = glorot(next(it), (ghc, nhid))
    p['mol1_b'] = jnp.zeros((1, nhid), jnp.float32)
    p['mol2_w'] = glorot(next(it), (nhid, nout))
    p['mol2_b'] = jnp.zeros((1, nout), jnp.float32)
    # Text encoder (synthetic BERT-like; pretrained HF weights are not reproducible here)
    p['word_emb'] = 0.02 * jax.random.normal(next(it), (vocab, hdim), jnp.float32)
    p['pos_emb'] = 0.02 * jax.random.normal(next(it), (max_pos, hdim), jnp.float32)
    p['type_emb'] = 0.02 * jax.random.normal(next(it), (1, hdim), jnp.float32)
    p['emb_ln_g'] = jnp.ones((1, hdim), jnp.float32)
    p['emb_ln_b'] = jnp.zeros((1, hdim), jnp.float32)
    for nm in ['wq', 'wk', 'wv', 'wo']:
        p[nm] = 0.02 * jax.random.normal(next(it), (hdim, hdim), jnp.float32)
        p['b' + nm[1]] = jnp.zeros((1, hdim), jnp.float32)
    p['ln1_g'] = jnp.ones((1, hdim), jnp.float32)
    p['ln1_b'] = jnp.zeros((1, hdim), jnp.float32)
    p['w_ff1'] = 0.02 * jax.random.normal(next(it), (hdim, ffdim), jnp.float32)
    p['b_ff1'] = jnp.zeros((1, ffdim), jnp.float32)
    p['w_ff2'] = 0.02 * jax.random.normal(next(it), (ffdim, hdim), jnp.float32)
    p['b_ff2'] = jnp.zeros((1, hdim), jnp.float32)
    p['ln2_g'] = jnp.ones((1, hdim), jnp.float32)
    p['ln2_b'] = jnp.zeros((1, hdim), jnp.float32)
    return p


def build_graph_structures(edge_index, batch, num_nodes, num_graphs):
    src, dst = edge_index
    a = jnp.zeros((num_nodes, num_nodes), jnp.float32).at[dst, src].set(1.0)
    a_hat = jnp.minimum(a + jnp.eye(num_nodes, dtype=jnp.float32), 1.0)   # add self-loops
    deg = jnp.sum(a_hat, axis=1)
    dinv = jax.lax.rsqrt(deg)
    adj_norm = dinv[:, None] * a_hat * dinv[None, :]                      # D^-1/2 Â D^-1/2
    gat_mask = (a_hat > 0).astype(jnp.float32)
    counts = jnp.zeros((num_graphs,), jnp.float32).at[batch].add(1.0)
    pool = (jax.nn.one_hot(batch, num_graphs, dtype=jnp.float32).T
            / counts[:, None])                                            # [G, N] mean-pool
    return adj_norm, gat_mask, pool


if __name__ == "__main__":
    # Small shapes consistent with the module.
    NUM_NODE_FEATURES = 16           # must equal graph_hidden_channels for the residuals
    GRAPH_HIDDEN = 16
    NHID = 32
    NOUT = 16
    NUM_NODES = 16
    NUM_GRAPHS = 2
    VOCAB, HDIM, FFDIM, SEQ, BATCH, MAX_POS = 64, 32, 64, 8, 2, 16

    key = jax.random.PRNGKey(0)
    k_param, k_x, k_ids = jax.random.split(key, 3)
    params = init_params(k_param, NUM_NODE_FEATURES, GRAPH_HIDDEN, NHID, NOUT,
                         VOCAB, HDIM, FFDIM, MAX_POS)

    pack_params, forward = build_model(
        N=NUM_NODES, F=GRAPH_HIDDEN, G=NUM_GRAPHS, NHID=NHID, NOUT=NOUT,
        B=BATCH, S=SEQ, H=HDIM, FF=FFDIM)
    w_slab, p_slab = pack_params(params)                    # packed once, reused per call
    embed_params = {k: params[k] for k in ('word_emb', 'pos_emb', 'type_emb')}

    # Two chain graphs of 8 nodes each (undirected edges).
    src, dst = [], []
    for g in range(NUM_GRAPHS):
        base = g * 8
        for i in range(7):
            src += [base + i, base + i + 1]
            dst += [base + i + 1, base + i]
    edge_index = jnp.array([src, dst], dtype=jnp.int32)
    batch = jnp.array([0] * 8 + [1] * 8, dtype=jnp.int32)

    x = jax.random.normal(k_x, (NUM_NODES, NUM_NODE_FEATURES), jnp.float32)
    adj_norm, gat_mask, pool = build_graph_structures(edge_index, batch, NUM_NODES, NUM_GRAPHS)

    input_ids = jax.random.randint(k_ids, (BATCH, SEQ), 0, VOCAB, dtype=jnp.int32)
    attention_mask = jnp.ones((BATCH, SEQ), jnp.int32).at[1, 6:].set(0)

    graph_encoded, text_encoded = forward(
        w_slab, p_slab, embed_params, x, adj_norm, gat_mask, pool,
        input_ids, attention_mask)
    jax.block_until_ready((graph_encoded, text_encoded))
    assert graph_encoded.shape == (NUM_GRAPHS, NOUT)
    assert text_encoded.shape == (BATCH, HDIM)
    assert bool(jnp.all(jnp.isfinite(graph_encoded))) and bool(jnp.all(jnp.isfinite(text_encoded)))
    print("KERNEL_OK")
</pallas_src>

<mosaic_0001>
module attributes {stable_mosaic.version = 11 : i64} {
  func.func @kernel(%arg0: memref<272x128xbf16, #tpu.memory_space<vmem>>, %arg1: memref<24x128xf32, #tpu.memory_space<vmem>>, %arg2: memref<40x128xf32, #tpu.memory_space<vmem>>, %arg3: memref<24x128xf32, #tpu.memory_space<vmem>>) attributes {dimension_semantics = [], scalar_prefetch = 0 : i64, scratch_operands = 0 : i64, tpu.core_type = #tpu.core_type<tc>} {
    %cst = arith.constant 0.000000e+00 : f32
    %0 = vector.broadcast %cst : f32 to vector<24x128xf32>
    %c0 = arith.constant 0 : index
    %c0_0 = arith.constant 0 : index
    %1 = vector.load %arg3[%c0, %c0_0] : memref<24x128xf32, #tpu.memory_space<vmem>>, vector<24x128xf32>
    tpu.vector_store %arg3[%c0, %c0_0], %0 {strides = array<i32>} : memref<24x128xf32, #tpu.memory_space<vmem>>, vector<24x128xf32>,
    %c0_1 = arith.constant 0 : index
    %c0_2 = arith.constant 0 : index
    %2 = vector.load %arg2[%c0_1, %c0_2] : memref<40x128xf32, #tpu.memory_space<vmem>>, vector<16x16xf32>
    %c0_3 = arith.constant 0 : index
    %c16 = arith.constant 16 : index
    %3 = vector.load %arg2[%c0_3, %c16] : memref<40x128xf32, #tpu.memory_space<vmem>>, vector<16x16xf32>
    %4 = arith.truncf %3 : vector<16x16xf32> to vector<16x16xbf16>
    %c0_4 = arith.constant 0 : index
    %c32 = arith.constant 32 : index
    %5 = vector.load %arg2[%c0_4, %c32] : memref<40x128xf32, #tpu.memory_space<vmem>>, vector<16x16xf32>
    %c16_5 = arith.constant 16 : index
    %c0_6 = arith.constant 0 : index
    %6 = vector.load %arg2[%c16_5, %c0_6] : memref<40x128xf32, #tpu.memory_space<vmem>>, vector<2x16xf32>
    %cst_7 = arith.constant 1.000000e+00 : f32
    %7 = vector.broadcast %cst_7 : f32 to vector<1x16xf32>
    %8 = arith.truncf %2 : vector<16x16xf32> to vector<16x16xbf16>
    %c0_8 = arith.constant 0 : index
    %c0_9 = arith.constant 0 : index
    %9 = vector.load %arg0[%c0_8, %c0_9] : memref<272x128xbf16, #tpu.memory_space<vmem>>, vector<16x16xbf16>
    %cst_10 = arith.constant dense<0.000000e+00> : vector<16x16xf32>
    %10 = tpu.matmul %8, %9, %cst_10 {dimension_numbers = #tpu.dot_dimension_numbers<[1], [0], [0], [1], [0, 0, 1, 1], [], []>} : vector<16x16xbf16>, vector<16x16xbf16>, vector<16x16xf32> -> vector<16x16xf32>
    %11 = arith.truncf %10 : vector<16x16xf32> to vector<16x16xbf16>
    %cst_11 = arith.constant dense<0.000000e+00> : vector<16x16xf32>
    %12 = tpu.matmul %4, %11, %cst_11 {dimension_numbers = #tpu.dot_dimension_numbers<[1], [0], [0], [1], [0, 0, 1, 1], [], []>} : vector<16x16xbf16>, vector<16x16xbf16>, vector<16x16xf32> -> vector<16x16xf32>
    %c0_12 = arith.constant 0 : index
    %c0_13 = arith.constant 0 : index
    %13 = vector.load %arg1[%c0_12, %c0_13] : memref<24x128xf32, #tpu.memory_space<vmem>>, vector<1x16xf32>
    %14 = vector.broadcast %13 : vector<1x16xf32> to vector<16x16xf32>
    %15 = arith.addf %12, %14 : vector<16x16xf32>
    %c1 = arith.constant 1 : index
    %c0_14 = arith.constant 0 : index
    %16 = vector.load %arg1[%c1, %c0_14] : memref<24x128xf32, #tpu.memory_space<vmem>>, vector<1x16xf32>
    %c2 = arith.constant 2 : index
    %c0_15 = arith.constant 0 : index
    %17 = vector.load %arg1[%c2, %c0_15] : memref<24x128xf32, #tpu.memory_space<vmem>>, vector<1x16xf32>
    %cst_16 = arith.constant dense<0.000000e+00> : vector<1x16xf32>
    %18 = tpu.matmul %7, %15, %cst_16 {dimension_numbers = #tpu.dot_dimension_numbers<[1], [0], [0], [1], [0, 0, 1, 1], [], []>} : vector<1x16xf32>, vector<16x16xf32>, vector<1x16xf32> -> vector<1x16xf32>
    %cst_17 = arith.constant 6.250000e-02 : f32
    %19 = vector.broadcast %cst_17 : f32 to vector<1x16xf32>
    %20 = arith.mulf %18, %19 : vector<1x16xf32>
    %21 = arith.mulf %15, %15 : vector<16x16xf32>
    %cst_18 = arith.constant dense<0.000000e+00> : vector<1x16xf32>
    %22 = tpu.matmul %7, %21, %cst_18 {dimension_numbers = #tpu.dot_dimension_numbers<[1], [0], [0], [1], [0, 0, 1, 1], [], []>} : vector<1x16xf32>, vector<16x16xf32>, vector<1x16xf32> -> vector<1x16xf32>
    %cst_19 = arith.constant 6.250000e-02 : f32
    %23 = vector.broadcast %cst_19 : f32 to vector<1x16xf32>
    %24 = arith.mulf %22, %23 : vector<1x16xf32>
    %25 = arith.mulf %20, %20 : vector<1x16xf32>
    %26 = arith.subf %24, %25 : vector<1x16xf32>
    %cst_20 = arith.constant 0.000000e+00 : f32
    %27 = vector.broadcast %cst_20 : f32 to vector<1x16xf32>
    %28 = arith.maximumf %26, %27 : vector<1x16xf32>
    %29 = vector.broadcast %20 : vector<1x16xf32> to vector<16x16xf32>
    %30 = arith.subf %15, %29 : vector<16x16xf32>
    %cst_21 = arith.constant 9.99999974E-6 : f32
    %31 = vector.broadcast %cst_21 : f32 to vector<1x16xf32>
    %32 = arith.addf %28, %31 : vector<1x16xf32>
    %33 = math.rsqrt %32 : vector<1x16xf32>
    %34 = vector.broadcast %33 : vector<1x16xf32> to vector<16x16xf32>
    %35 = arith.mulf %30, %34 : vector<16x16xf32>
    %36 = vector.broadcast %16 : vector<1x16xf32> to vector<16x16xf32>
    %37 = arith.mulf %35, %36 : vector<16x16xf32>
    %38 = vector.broadcast %17 : vector<1x16xf32> to vector<16x16xf32>
    %39 = arith.addf %37, %38 : vector<16x16xf32>
    %cst_22 = arith.constant 0.000000e+00 : f32
    %40 = vector.broadcast %cst_22 : f32 to vector<16x16xf32>
    %41 = arith.maximumf %39, %40 : vector<16x16xf32>
    %42 = arith.addf %41, %2 : vector<16x16xf32>
    %43 = arith.truncf %42 : vector<16x16xf32> to vector<16x16xbf16>
    %c16_23 = arith.constant 16 : index
    %c0_24 = arith.constant 0 : index
    %44 = vector.load %arg0[%c16_23, %c0_24] : memref<272x128xbf16, #tpu.memory_space<vmem>>, vector<16x16xbf16>
    %cst_25 = arith.constant dense<0.000000e+00> : vector<16x16xf32>
    %45 = tpu.matmul %43, %44, %cst_25 {dimension_numbers = #tpu.dot_dimension_numbers<[1], [0], [0], [1], [0, 0, 1, 1], [], []>} : vector<16x16xbf16>, vector<16x16xbf16>, vector<16x16xf32> -> vector<16x16xf32>
    %46 = arith.truncf %45 : vector<16x16xf32> to vector<16x16xbf16>
    %cst_26 = arith.constant dense<0.000000e+00> : vector<16x16xf32>
    %47 = tpu.matmul %4, %46, %cst_26 {dimension_numbers = #tpu.dot_dimension_numbers<[1], [0], [0], [1], [0, 0, 1, 1], [], []>} : vector<16x16xbf16>, vector<16x16xbf16>, vector<16x16xf32> -> vector<16x16xf32>
    %c3 = arith.constant 3 : index
    %c0_27 = arith.constant 0 : index
    %48 = vector.load %arg1[%c3, %c0_27] : memref<24x128xf32, #tpu.memory_space<vmem>>, vector<1x16xf32>
    %49 = vector.broadcast %48 : vector<1x16xf32> to vector<16x16xf32>
    %50 = arith.addf %47, %49 : vector<16x16xf32>
    %c4 = arith.constant 4 : index
    %c0_28 = arith.constant 0 : index
    %51 = vector.load %arg1[%c4, %c0_28] : memref<24x128xf32, #tpu.memory_space<vmem>>, vector<1x16xf32>
    %c5 = arith.constant 5 : index
    %c0_29 = arith.constant 0 : index
    %52 = vector.load %arg1[%c5, %c0_29] : memref<24x128xf32, #tpu.memory_space<vmem>>, vector<1x16xf32>
    %cst_30 = arith.constant dense<0.000000e+00> : vector<1x16xf32>
    %53 = tpu.matmul %7, %50, %cst_30 {dimension_numbers = #tpu.dot_dimension_numbers<[1], [0], [0], [1], [0, 0, 1, 1], [], []>} : vector<1x16xf32>, vector<16x16xf32>, vector<1x16xf32> -> vector<1x16xf32>
    %cst_31 = arith.constant 6.250000e-02 : f32
    %54 = vector.broadcast %cst_31 : f32 to vector<1x16xf32>
    %55 = arith.mulf %53, %54 : vector<1x16xf32>
    %56 = arith.mulf %50, %50 : vector<16x16xf32>
    %cst_32 = arith.constant dense<0.000000e+00> : vector<1x16xf32>
    %57 = tpu.matmul %7, %56, %cst_32 {dimension_numbers = #tpu.dot_dimension_numbers<[1], [0], [0], [1], [0, 0, 1, 1], [], []>} : vector<1x16xf32>, vector<16x16xf32>, vector<1x16xf32> -> vector<1x16xf32>
    %cst_33 = arith.constant 6.250000e-02 : f32
    %58 = vector.broadcast %cst_33 : f32 to vector<1x16xf32>
    %59 = arith.mulf %57, %58 : vector<1x16xf32>
    %60 = arith.mulf %55, %55 : vector<1x16xf32>
    %61 = arith.subf %59, %60 : vector<1x16xf32>
    %cst_34 = arith.constant 0.000000e+00 : f32
    %62 = vector.broadcast %cst_34 : f32 to vector<1x16xf32>
    %63 = arith.maximumf %61, %62 : vector<1x16xf32>
    %64 = vector.broadcast %55 : vector<1x16xf32> to vector<16x16xf32>
    %65 = arith.subf %50, %64 : vector<16x16xf32>
    %cst_35 = arith.constant 9.99999974E-6 : f32
    %66 = vector.broadcast %cst_35 : f32 to vector<1x16xf32>
    %67 = arith.addf %63, %66 : vector<1x16xf32>
    %68 = math.rsqrt %67 : vector<1x16xf32>
    %69 = vector.broadcast %68 : vector<1x16xf32> to vector<16x16xf32>
    %70 = arith.mulf %65, %69 : vector<16x16xf32>
    %71 = vector.broadcast %51 : vector<1x16xf32> to vector<16x16xf32>
    %72 = arith.mulf %70, %71 : vector<16x16xf32>
    %73 = vector.broadcast %52 : vector<1x16xf32> to vector<16x16xf32>
    %74 = arith.addf %72, %73 : vector<16x16xf32>
    %cst_36 = arith.constant 0.000000e+00 : f32
    %75 = vector.broadcast %cst_36 : f32 to vector<16x16xf32>
    %76 = arith.maximumf %74, %75 : vector<16x16xf32>
    %77 = arith.addf %76, %42 : vector<16x16xf32>
    %78 = arith.truncf %77 : vector<16x16xf32> to vector<16x16xbf16>
    %c32_37 = arith.constant 32 : index
    %c0_38 = arith.constant 0 : index
    %79 = vector.load %arg0[%c32_37, %c0_38] : memref<272x128xbf16, #tpu.memory_space<vmem>>, vector<16x16xbf16>
    %cst_39 = arith.constant dense<0.000000e+00> : vector<16x16xf32>
    %80 = tpu.matmul %78, %79, %cst_39 {dimension_numbers = #tpu.dot_dimension_numbers<[1], [0], [0], [1], [0, 0, 1, 1], [], []>} : vector<16x16xbf16>, vector<16x16xbf16>, vector<16x16xf32> -> vector<16x16xf32>
    %81 = arith.truncf %80 : vector<16x16xf32> to vector<16x16xbf16>
    %cst_40 = arith.constant dense<0.000000e+00> : vector<16x16xf32>
    %82 = tpu.matmul %4, %81, %cst_40 {dimension_numbers = #tpu.dot_dimension_numbers<[1], [0], [0], [1], [0, 0, 1, 1], [], []>} : vector<16x16xbf16>, vector<16x16xbf16>, vector<16x16xf32> -> vector<16x16xf32>
    %c6 = arith.constant 6 : index
    %c0_41 = arith.constant 0 : index
    %83 = vector.load %arg1[%c6, %c0_41] : memref<24x128xf32, #tpu.memory_space<vmem>>, vector<1x16xf32>
    %84 = vector.broadcast %83 : vector<1x16xf32> to vector<16x16xf32>
    %85 = arith.addf %82, %84 : vector<16x16xf32>
    %c7 = arith.constant 7 : index
    %c0_42 = arith.constant 0 : index
    %86 = vector.load %arg1[%c7, %c0_42] : memref<24x128xf32, #tpu.memory_space<vmem>>, vector<1x16xf32>
    %c8 = arith.constant 8 : index
    %c0_43 = arith.constant 0 : index
    %87 = vector.load %arg1[%c8, %c0_43] : memref<24x128xf32, #tpu.memory_space<vmem>>, vector<1x16xf32>
    %cst_44 = arith.constant dense<0.000000e+00> : vector<1x16xf32>
    %88 = tpu.matmul %7, %85, %cst_44 {dimension_numbers = #tpu.dot_dimension_numbers<[1], [0], [0], [1], [0, 0, 1, 1], [], []>} : vector<1x16xf32>, vector<16x16xf32>, vector<1x16xf32> -> vector<1x16xf32>
    %cst_45 = arith.constant 6.250000e-02 : f32
    %89 = vector.broadcast %cst_45 : f32 to vector<1x16xf32>
    %90 = arith.mulf %88, %89 : vector<1x16xf32>
    %91 = arith.mulf %85, %85 : vector<16x16xf32>
    %cst_46 = arith.constant dense<0.000000e+00> : vector<1x16xf32>
    %92 = tpu.matmul %7, %91, %cst_46 {dimension_numbers = #tpu.dot_dimension_numbers<[1], [0], [0], [1], [0, 0, 1, 1], [], []>} : vector<1x16xf32>, vector<16x16xf32>, vector<1x16xf32> -> vector<1x16xf32>
    %cst_47 = arith.constant 6.250000e-02 : f32
    %93 = vector.broadcast %cst_47 : f32 to vector<1x16xf32>
    %94 = arith.mulf %92, %93 : vector<1x16xf32>
    %95 = arith.mulf %90, %90 : vector<1x16xf32>
    %96 = arith.subf %94, %95 : vector<1x16xf32>
    %cst_48 = arith.constant 0.000000e+00 : f32
    %97 = vector.broadcast %cst_48 : f32 to vector<1x16xf32>
    %98 = arith.maximumf %96, %97 : vector<1x16xf32>
    %99 = vector.broadcast %90 : vector<1x16xf32> to vector<16x16xf32>
    %100 = arith.subf %85, %99 : vector<16x16xf32>
    %cst_49 = arith.constant 9.99999974E-6 : f32
    %101 = vector.broadcast %cst_49 : f32 to vector<1x16xf32>
    %102 = arith.addf %98, %101 : vector<1x16xf32>
    %103 = math.rsqrt %102 : vector<1x16xf32>
    %104 = vector.broadcast %103 : vector<1x16xf32> to vector<16x16xf32>
    %105 = arith.mulf %100, %104 : vector<16x16xf32>
    %106 = vector.broadcast %86 : vector<1x16xf32> to vector<16x16xf32>
    %107 = arith.mulf %105, %106 : vector<16x16xf32>
    %108 = vector.broadcast %87 : vector<1x16xf32> to vector<16x16xf32>
    %109 = arith.addf %107, %108 : vector<16x16xf32>
    %cst_50 = arith.constant 0.000000e+00 : f32
    %110 = vector.broadcast %cst_50 : f32 to vector<16x16xf32>
    %111 = arith.maximumf %109, %110 : vector<16x16xf32>
    %112 = arith.addf %111, %77 : vector<16x16xf32>
    %113 = arith.truncf %112 : vector<16x16xf32> to vector<16x16xbf16>
    %c48 = arith.constant 48 : index
    %c0_51 = arith.constant 0 : index
    %114 = vector.load %arg0[%c48, %c0_51] : memref<272x128xbf16, #tpu.memory_space<vmem>>, vector<16x18xbf16>
    %cst_52 = arith.constant dense<0.000000e+00> : vector<16x18xf32>
    %115 = tpu.matmul %113, %114, %cst_52 {dimension_numbers = #tpu.dot_dimension_numbers<[1], [0], [0], [1], [0, 0, 1, 1], [], []>} : vector<16x16xbf16>, vector<16x18xbf16>, vector<16x18xf32> -> vector<16x18xf32>
    %116 = vector.extract_strided_slice %115 {offsets = [0, 0], sizes = [16, 16], strides = [1, 1]} : vector<16x18xf32> to vector<16x16xf32>
    %117 = vector.extract_strided_slice %115 {offsets = [0, 16], sizes = [16, 1], strides = [1, 1]} : vector<16x18xf32> to vector<16x1xf32>
    %118 = vector.extract_strided_slice %115 {offsets = [0, 17], sizes = [16, 1], strides = [1, 1]} : vector<16x18xf32> to vector<16x1xf32>
    %119 = tpu.transpose %117, [1, 0] : vector<16x1xf32> -> vector<1x16xf32>
    %120 = vector.broadcast %118 : vector<16x1xf32> to vector<16x16xf32>
    %121 = vector.broadcast %119 : vector<1x16xf32> to vector<16x16xf32>
    %122 = arith.addf %120, %121 : vector<16x16xf32>
    %cst_53 = arith.constant 0.000000e+00 : f32
    %123 = vector.broadcast %cst_53 : f32 to vector<16x16xf32>
    %124 = arith.cmpf ogt, %122, %123 : vector<16x16xf32>
    %cst_54 = arith.constant 2.000000e-01 : f32
    %125 = vector.broadcast %cst_54 : f32 to vector<16x16xf32>
    %126 = arith.mulf %125, %122 : vector<16x16xf32>
    %127 = arith.select %124, %122, %126 : vector<16x16xi1>, vector<16x16xf32>
    %cst_55 = arith.constant 0.000000e+00 : f32
    %128 = vector.broadcast %cst_55 : f32 to vector<16x16xf32>
    %129 = arith.cmpf ogt, %5, %128 : vector<16x16xf32>
    %cst_56 = arith.constant -1.000000e+30 : f32
    %130 = vector.broadcast %cst_56 : f32 to vector<16x16xf32>
    %131 = arith.select %129, %127, %130 : vector<16x16xi1>, vector<16x16xf32>
    %cst_57 = arith.constant dense<0xFF800000> : vector<16xf32>
    %132 = vector.multi_reduction <maximumf>, %131, %cst_57 [1] : vector<16x16xf32> to vector<16xf32>
    %133 = vector.shape_cast %132 : vector<16xf32> to vector<16x1xf32>
    %134 = vector.broadcast %133 : vector<16x1xf32> to vector<16x16xf32>
    %135 = arith.subf %131, %134 : vector<16x16xf32>
    %136 = math.exp %135 : vector<16x16xf32>
    %cst_58 = arith.constant dense<0.000000e+00> : vector<16xf32>
    %137 = vector.multi_reduction <add>, %136, %cst_58 [1] : vector<16x16xf32> to vector<16xf32>
    %138 = vector.shape_cast %137 : vector<16xf32> to vector<16x1xf32>
    %139 = tpu.reciprocal %138 {approx = true} : vector<16x1xf32> -> vector<16x1xf32>
    %140 = vector.broadcast %139 : vector<16x1xf32> to vector<16x16xf32>
    %141 = arith.mulf %136, %140 : vector<16x16xf32>
    %142 = arith.truncf %141 : vector<16x16xf32> to vector<16x16xbf16>
    %143 = arith.truncf %116 : vector<16x16xf32> to vector<16x16xbf16>
    %cst_59 = arith.constant dense<0.000000e+00> : vector<16x16xf32>
    %144 = tpu.matmul %142, %143, %cst_59 {dimension_numbers = #tpu.dot_dimension_numbers<[1], [0], [0], [1], [0, 0, 1, 1], [], []>} : vector<16x16xbf16>, vector<16x16xbf16>, vector<16x16xf32> -> vector<16x16xf32>
    %c9 = arith.constant 9 : index
    %c0_60 = arith.constant 0 : index
    %145 = vector.load %arg1[%c9, %c0_60] : memref<24x128xf32, #tpu.memory_space<vmem>>, vector<1x16xf32>
    %146 = vector.broadcast %145 : vector<1x16xf32> to vector<16x16xf32>
    %147 = arith.addf %144, %146 : vector<16x16xf32>
    %c10 = arith.constant 10 : index
    %c0_61 = arith.constant 0 : index
    %148 = vector.load %arg1[%c10, %c0_61] : memref<24x128xf32, #tpu.memory_space<vmem>>, vector<1x16xf32>
    %c11 = arith.constant 11 : index
    %c0_62 = arith.constant 0 : index
    %149 = vector.load %arg1[%c11, %c0_62] : memref<24x128xf32, #tpu.memory_space<vmem>>, vector<1x16xf32>
    %cst_63 = arith.constant dense<0.000000e+00> : vector<1x16xf32>
    %150 = tpu.matmul %7, %147, %cst_63 {dimension_numbers = #tpu.dot_dimension_numbers<[1], [0], [0], [1], [0, 0, 1, 1], [], []>} : vector<1x16xf32>, vector<16x16xf32>, vector<1x16xf32> -> vector<1x16xf32>
    %cst_64 = arith.constant 6.250000e-02 : f32
    %151 = vector.broadcast %cst_64 : f32 to vector<1x16xf32>
    %152 = arith.mulf %150, %151 : vector<1x16xf32>
    %153 = arith.mulf %147, %147 : vector<16x16xf32>
    %cst_65 = arith.constant dense<0.000000e+00> : vector<1x16xf32>
    %154 = tpu.matmul %7, %153, %cst_65 {dimension_numbers = #tpu.dot_dimension_numbers<[1], [0], [0], [1], [0, 0, 1, 1], [], []>} : vector<1x16xf32>, vector<16x16xf32>, vector<1x16xf32> -> vector<1x16xf32>
    %cst_66 = arith.constant 6.250000e-02 : f32
    %155 = vector.broadcast %cst_66 : f32 to vector<1x16xf32>
    %156 = arith.mulf %154, %155 : vector<1x16xf32>
    %157 = arith.mulf %152, %152 : vector<1x16xf32>
    %158 = arith.subf %156, %157 : vector<1x16xf32>
    %cst_67 = arith.constant 0.000000e+00 : f32
    %159 = vector.broadcast %cst_67 : f32 to vector<1x16xf32>
    %160 = arith.maximumf %158, %159 : vector<1x16xf32>
    %161 = vector.broadcast %152 : vector<1x16xf32> to vector<16x16xf32>
    %162 = arith.subf %147, %161 : vector<16x16xf32>
    %cst_68 = arith.constant 9.99999974E-6 : f32
    %163 = vector.broadcast %cst_68 : f32 to vector<1x16xf32>
    %164 = arith.addf %160, %163 : vector<1x16xf32>
    %165 = math.rsqrt %164 : vector<1x16xf32>
    %166 = vector.broadcast %165 : vector<1x16xf32> to vector<16x16xf32>
    %167 = arith.mulf %162, %166 : vector<16x16xf32>
    %168 = vector.broadcast %148 : vector<1x16xf32> to vector<16x16xf32>
    %169 = arith.mulf %167, %168 : vector<16x16xf32>
    %170 = vector.broadcast %149 : vector<1x16xf32> to vector<16x16xf32>
    %171 = arith.addf %169, %170 : vector<16x16xf32>
    %cst_69 = arith.constant 0.000000e+00 : f32
    %172 = vector.broadcast %cst_69 : f32 to vector<16x16xf32>
    %173 = arith.maximumf %171, %172 : vector<16x16xf32>
    %174 = arith.addf %173, %112 : vector<16x16xf32>
    %cst_70 = arith.constant dense<0.000000e+00> : vector<2x16xf32>
    %175 = tpu.matmul %6, %174, %cst_70 {dimension_numbers = #tpu.dot_dimension_numbers<[1], [0], [0], [1], [0, 0, 1, 1], [], []>} : vector<2x16xf32>, vector<16x16xf32>, vector<2x16xf32> -> vector<2x16xf32>
    %176 = arith.truncf %175 : vector<2x16xf32> to vector<2x16xbf16>
    %c64 = arith.constant 64 : index
    %c0_71 = arith.constant 0 : index
    %177 = vector.load %arg0[%c64, %c0_71] : memref<272x128xbf16, #tpu.memory_space<vmem>>, vector<16x32xbf16>
    %cst_72 = arith.constant dense<0.000000e+00> : vector<2x32xf32>
    %178 = tpu.matmul %176, %177, %cst_72 {dimension_numbers = #tpu.dot_dimension_numbers<[1], [0], [0], [1], [0, 0, 1, 1], [], []>} : vector<2x16xbf16>, vector<16x32xbf16>, vector<2x32xf32> -> vector<2x32xf32>
    %c12 = arith.constant 12 : index
    %c0_73 = arith.constant 0 : index
    %179 = vector.load %arg1[%c12, %c0_73] : memref<24x128xf32, #tpu.memory_space<vmem>>, vector<1x32xf32>
    %180 = vector.broadcast %179 : vector<1x32xf32> to vector<2x32xf32>
    %181 = arith.addf %178, %180 : vector<2x32xf32>
    %cst_74 = arith.constant 0.000000e+00 : f32
    %182 = vector.broadcast %cst_74 : f32 to vector<2x32xf32>
    %183 = arith.maximumf %181, %182 : vector<2x32xf32>
    %184 = arith.truncf %183 : vector<2x32xf32> to vector<2x32xbf16>
    %c80 = arith.constant 80 : index
    %c0_75 = arith.constant 0 : index
    %185 = vector.load %arg0[%c80, %c0_75] : memref<272x128xbf16, #tpu.memory_space<vmem>>, vector<32x128xbf16>
    %cst_76 = arith.constant dense<0.000000e+00> : vector<2x128xf32>
    %186 = tpu.matmul %184, %185, %cst_76 {dimension_numbers = #tpu.dot_dimension_numbers<[1], [0], [0], [1], [0, 0, 1, 1], [], []>} : vector<2x32xbf16>, vector<32x128xbf16>, vector<2x128xf32> -> vector<2x128xf32>
    %c13 = arith.constant 13 : index
    %c0_77 = arith.constant 0 : index
    %187 = vector.load %arg1[%c13, %c0_77] : memref<24x128xf32, #tpu.memory_space<vmem>>, vector<1x128xf32>
    %188 = vector.broadcast %187 : vector<1x128xf32> to vector<2x128xf32>
    %189 = arith.addf %186, %188 : vector<2x128xf32>
    %c0_78 = arith.constant 0 : index
    %c0_79 = arith.constant 0 : index
    %190 = vector.load %arg3[%c0_78, %c0_79] : memref<24x128xf32, #tpu.memory_space<vmem>>, vector<2x128xf32>
    tpu.vector_store %arg3[%c0_78, %c0_79], %189 {strides = array<i32>} : memref<24x128xf32, #tpu.memory_space<vmem>>, vector<2x128xf32>,
    %c24 = arith.constant 24 : index
    %c0_80 = arith.constant 0 : index
    %191 = vector.load %arg2[%c24, %c0_80] : memref<40x128xf32, #tpu.memory_space<vmem>>, vector<16x32xf32>
    %c14 = arith.constant 14 : index
    %c0_81 = arith.constant 0 : index
    %192 = vector.load %arg1[%c14, %c0_81] : memref<24x128xf32, #tpu.memory_space<vmem>>, vector<1x32xf32>
    %c15 = arith.constant 15 : index
    %c0_82 = arith.constant 0 : index
    %193 = vector.load %arg1[%c15, %c0_82] : memref<24x128xf32, #tpu.memory_space<vmem>>, vector<1x32xf32>
    %cst_83 = arith.constant dense<0.000000e+00> : vector<16xf32>
    %194 = vector.multi_reduction <add>, %191, %cst_83 [1] : vector<16x32xf32> to vector<16xf32>
    %195 = vector.shape_cast %194 : vector<16xf32> to vector<16x1xf32>
    %cst_84 = arith.constant 3.200000e+01 : f32
    %196 = vector.broadcast %cst_84 : f32 to vector<16x1xf32>
    %197 = arith.divf %195, %196 : vector<16x1xf32>
    %198 = vector.broadcast %197 : vector<16x1xf32> to vector<16x32xf32>
    %199 = arith.subf %191, %198 : vector<16x32xf32>
    %200 = arith.mulf %199, %199 : vector<16x32xf32>
    %cst_85 = arith.constant dense<0.000000e+00> : vector<16xf32>
    %201 = vector.multi_reduction <add>, %200, %cst_85 [1] : vector<16x32xf32> to vector<16xf32>
    %202 = vector.shape_cast %201 : vector<16xf32> to vector<16x1xf32>
    %cst_86 = arith.constant 3.200000e+01 : f32
    %203 = vector.broadcast %cst_86 : f32 to vector<16x1xf32>
    %204 = arith.divf %202, %203 : vector<16x1xf32>
    %205 = vector.broadcast %197 : vector<16x1xf32> to vector<16x32xf32>
    %206 = arith.subf %191, %205 : vector<16x32xf32>
    %cst_87 = arith.constant 9.99999996E-13 : f32
    %207 = vector.broadcast %cst_87 : f32 to vector<16x1xf32>
    %208 = arith.addf %204, %207 : vector<16x1xf32>
    %209 = math.rsqrt %208 : vector<16x1xf32>
    %210 = vector.broadcast %209 : vector<16x1xf32> to vector<16x32xf32>
    %211 = arith.mulf %206, %210 : vector<16x32xf32>
    %212 = vector.broadcast %192 : vector<1x32xf32> to vector<16x32xf32>
    %213 = arith.mulf %211, %212 : vector<16x32xf32>
    %214 = vector.broadcast %193 : vector<1x32xf32> to vector<16x32xf32>
    %215 = arith.addf %213, %214 : vector<16x32xf32>
    %216 = arith.truncf %215 : vector<16x32xf32> to vector<16x32xbf16>
    %c112 = arith.constant 112 : index
    %c0_88 = arith.constant 0 : index
    %217 = vector.load %arg0[%c112, %c0_88] : memref<272x128xbf16, #tpu.memory_space<vmem>>, vector<32x96xbf16>
    %cst_89 = arith.constant dense<0.000000e+00> : vector<16x96xf32>
    %218 = tpu.matmul %216, %217, %cst_89 {dimension_numbers = #tpu.dot_dimension_numbers<[1], [0], [0], [1], [0, 0, 1, 1], [], []>} : vector<16x32xbf16>, vector<32x96xbf16>, vector<16x96xf32> -> vector<16x96xf32>
    %c16_90 = arith.constant 16 : index
    %c0_91 = arith.constant 0 : index
    %219 = vector.load %arg1[%c16_90, %c0_91] : memref<24x128xf32, #tpu.memory_space<vmem>>, vector<1x96xf32>
    %220 = vector.broadcast %219 : vector<1x96xf32> to vector<16x96xf32>
    %221 = arith.addf %218, %220 : vector<16x96xf32>
    %222 = vector.extract_strided_slice %221 {offsets = [0, 0], sizes = [16, 32], strides = [1, 1]} : vector<16x96xf32> to vector<16x32xf32>
    %223 = arith.truncf %222 : vector<16x32xf32> to vector<16x32xbf16>
    %224 = vector.extract_strided_slice %221 {offsets = [0, 32], sizes = [16, 32], strides = [1, 1]} : vector<16x96xf32> to vector<16x32xf32>
    %225 = arith.truncf %224 : vector<16x32xf32> to vector<16x32xbf16>
    %226 = vector.extract_strided_slice %221 {offsets = [0, 64], sizes = [16, 32], strides = [1, 1]} : vector<16x96xf32> to vector<16x32xf32>
    %227 = arith.truncf %226 : vector<16x32xf32> to vector<16x32xbf16>
    "tpu.trace_start"() <{level = 10 : i32, message = "qd,kd->qk"}> : () -> ()
    %cst_92 = arith.constant dense<0.000000e+00> : vector<16x16xf32>
    %228 = tpu.matmul %223, %225, %cst_92 {dimension_numbers = #tpu.dot_dimension_numbers<[1], [1], [0], [0], [0, 0, 1, 0], [], []>} : vector<16x32xbf16>, vector<16x32xbf16>, vector<16x16xf32> -> vector<16x16xf32>
    "tpu.trace_stop"() : () -> ()
    %c24_93 = arith.constant 24 : index
    %c32_94 = arith.constant 32 : index
    %229 = vector.load %arg2[%c24_93, %c32_94] : memref<40x128xf32, #tpu.memory_space<vmem>>, vector<16x1xf32>
    %c18 = arith.constant 18 : index
    %c0_95 = arith.constant 0 : index
    %230 = vector.load %arg2[%c18, %c0_95] : memref<40x128xf32, #tpu.memory_space<vmem>>, vector<1x16xf32>
    %231 = vector.broadcast %229 : vector<16x1xf32> to vector<16x16xf32>
    %232 = vector.broadcast %230 : vector<1x16xf32> to vector<16x16xf32>
    %233 = arith.cmpf oeq, %231, %232 : vector<16x16xf32>
    %cst_96 = arith.constant -1.000000e+30 : f32
    %234 = vector.broadcast %cst_96 : f32 to vector<16x16xf32>
    %235 = arith.select %233, %228, %234 : vector<16x16xi1>, vector<16x16xf32>
    %cst_97 = arith.constant dense<0xFF800000> : vector<16xf32>
    %236 = vector.multi_reduction <maximumf>, %235, %cst_97 [1] : vector<16x16xf32> to vector<16xf32>
    %237 = vector.shape_cast %236 : vector<16xf32> to vector<16x1xf32>
    %238 = vector.broadcast %237 : vector<16x1xf32> to vector<16x16xf32>
    %239 = arith.subf %235, %238 : vector<16x16xf32>
    %240 = math.exp %239 : vector<16x16xf32>
    %cst_98 = arith.constant dense<0.000000e+00> : vector<16xf32>
    %241 = vector.multi_reduction <add>, %240, %cst_98 [1] : vector<16x16xf32> to vector<16xf32>
    %242 = vector.shape_cast %241 : vector<16xf32> to vector<16x1xf32>
    %243 = tpu.reciprocal %242 {approx = true} : vector<16x1xf32> -> vector<16x1xf32>
    %244 = vector.broadcast %243 : vector<16x1xf32> to vector<16x16xf32>
    %245 = arith.mulf %240, %244 : vector<16x16xf32>
    %246 = arith.truncf %245 : vector<16x16xf32> to vector<16x16xbf16>
    %cst_99 = arith.constant dense<0.000000e+00> : vector<16x32xf32>
    %247 = tpu.matmul %246, %227, %cst_99 {dimension_numbers = #tpu.dot_dimension_numbers<[1], [0], [0], [1], [0, 0, 1, 1], [], []>} : vector<16x16xbf16>, vector<16x32xbf16>, vector<16x32xf32> -> vector<16x32xf32>
    %248 = arith.truncf %247 : vector<16x32xf32> to vector<16x32xbf16>
    %c144 = arith.constant 144 : index
    %c0_100 = arith.constant 0 : index
    %249 = vector.load %arg0[%c144, %c0_100] : memref<272x128xbf16, #tpu.memory_space<vmem>>, vector<32x32xbf16>
    %cst_101 = arith.constant dense<0.000000e+00> : vector<16x32xf32>
    %250 = tpu.matmul %248, %249, %cst_101 {dimension_numbers = #tpu.dot_dimension_numbers<[1], [0], [0], [1], [0, 0, 1, 1], [], []>} : vector<16x32xbf16>, vector<32x32xbf16>, vector<16x32xf32> -> vector<16x32xf32>
    %c17 = arith.constant 17 : index
    %c0_102 = arith.constant 0 : index
    %251 = vector.load %arg1[%c17, %c0_102] : memref<24x128xf32, #tpu.memory_space<vmem>>, vector<1x32xf32>
    %252 = vector.broadcast %251 : vector<1x32xf32> to vector<16x32xf32>
    %253 = arith.addf %250, %252 : vector<16x32xf32>
    %254 = arith.addf %215, %253 : vector<16x32xf32>
    %c18_103 = arith.constant 18 : index
    %c0_104 = arith.constant 0 : index
    %255 = vector.load %arg1[%c18_103, %c0_104] : memref<24x128xf32, #tpu.memory_space<vmem>>, vector<1x32xf32>
    %c19 = arith.constant 19 : index
    %c0_105 = arith.constant 0 : index
    %256 = vector.load %arg1[%c19, %c0_105] : memref<24x128xf32, #tpu.memory_space<vmem>>, vector<1x32xf32>
    %cst_106 = arith.constant dense<0.000000e+00> : vector<16xf32>
    %257 = vector.multi_reduction <add>, %254, %cst_106 [1] : vector<16x32xf32> to vector<16xf32>
    %258 = vector.shape_cast %257 : vector<16xf32> to vector<16x1xf32>
    %cst_107 = arith.constant 3.200000e+01 : f32
    %259 = vector.broadcast %cst_107 : f32 to vector<16x1xf32>
    %260 = arith.divf %258, %259 : vector<16x1xf32>
    %261 = vector.broadcast %260 : vector<16x1xf32> to vector<16x32xf32>
    %262 = arith.subf %254, %261 : vector<16x32xf32>
    %263 = arith.mulf %262, %262 : vector<16x32xf32>
    %cst_108 = arith.constant dense<0.000000e+00> : vector<16xf32>
    %264 = vector.multi_reduction <add>, %263, %cst_108 [1] : vector<16x32xf32> to vector<16xf32>
    %265 = vector.shape_cast %264 : vector<16xf32> to vector<16x1xf32>
    %cst_109 = arith.constant 3.200000e+01 : f32
    %266 = vector.broadcast %cst_109 : f32 to vector<16x1xf32>
    %267 = arith.divf %265, %266 : vector<16x1xf32>
    %268 = vector.broadcast %260 : vector<16x1xf32> to vector<16x32xf32>
    %269 = arith.subf %254, %268 : vector<16x32xf32>
    %cst_110 = arith.constant 9.99999996E-13 : f32
    %270 = vector.broadcast %cst_110 : f32 to vector<16x1xf32>
    %271 = arith.addf %267, %270 : vector<16x1xf32>
    %272 = math.rsqrt %271 : vector<16x1xf32>
    %273 = vector.broadcast %272 : vector<16x1xf32> to vector<16x32xf32>
    %274 = arith.mulf %269, %273 : vector<16x32xf32>
    %275 = vector.broadcast %255 : vector<1x32xf32> to vector<16x32xf32>
    %276 = arith.mulf %274, %275 : vector<16x32xf32>
    %277 = vector.broadcast %256 : vector<1x32xf32> to vector<16x32xf32>
    %278 = arith.addf %276, %277 : vector<16x32xf32>
    %279 = arith.truncf %278 : vector<16x32xf32> to vector<16x32xbf16>
    %c176 = arith.constant 176 : index
    %c0_111 = arith.constant 0 : index
    %280 = vector.load %arg0[%c176, %c0_111] : memref<272x128xbf16, #tpu.memory_space<vmem>>, vector<32x64xbf16>
    %cst_112 = arith.constant dense<0.000000e+00> : vector<16x64xf32>
    %281 = tpu.matmul %279, %280, %cst_112 {dimension_numbers = #tpu.dot_dimension_numbers<[1], [0], [0], [1], [0, 0, 1, 1], [], []>} : vector<16x32xbf16>, vector<32x64xbf16>, vector<16x64xf32> -> vector<16x64xf32>
    %c20 = arith.constant 20 : index
    %c0_113 = arith.constant 0 : index
    %282 = vector.load %arg1[%c20, %c0_113] : memref<24x128xf32, #tpu.memory_space<vmem>>, vector<1x64xf32>
    %283 = vector.broadcast %282 : vector<1x64xf32> to vector<16x64xf32>
    %284 = arith.addf %281, %283 : vector<16x64xf32>
    %cst_114 = arith.constant 5.000000e-01 : f32
    %285 = vector.broadcast %cst_114 : f32 to vector<16x64xf32>
    %286 = arith.mulf %285, %284 : vector<16x64xf32>
    %cst_115 = arith.constant 4.471500e-02 : f32
    %287 = vector.broadcast %cst_115 : f32 to vector<16x64xf32>
    %288 = arith.mulf %287, %284 : vector<16x64xf32>
    %289 = arith.mulf %288, %284 : vector<16x64xf32>
    %290 = arith.mulf %289, %284 : vector<16x64xf32>
    %291 = arith.addf %284, %290 : vector<16x64xf32>
    %cst_116 = arith.constant 0.797884583 : f32
    %292 = vector.broadcast %cst_116 : f32 to vector<16x64xf32>
    %293 = arith.mulf %292, %291 : vector<16x64xf32>
    %294 = math.tanh %293 : vector<16x64xf32>
    %cst_117 = arith.constant 1.000000e+00 : f32
    %295 = vector.broadcast %cst_117 : f32 to vector<16x64xf32>
    %296 = arith.addf %295, %294 : vector<16x64xf32>
    %297 = arith.mulf %286, %296 : vector<16x64xf32>
    %298 = arith.truncf %297 : vector<16x64xf32> to vector<16x64xbf16>
    %c208 = arith.constant 208 : index
    %c0_118 = arith.constant 0 : index
    %299 = vector.load %arg0[%c208, %c0_118] : memref<272x128xbf16, #tpu.memory_space<vmem>>, vector<64x32xbf16>
    %cst_119 = arith.constant dense<0.000000e+00> : vector<16x32xf32>
    %300 = tpu.matmul %298, %299, %cst_119 {dimension_numbers = #tpu.dot_dimension_numbers<[1], [0], [0], [1], [0, 0, 1, 1], [], []>} : vector<16x64xbf16>, vector<64x32xbf16>, vector<16x32xf32> -> vector<16x32xf32>
    %c21 = arith.constant 21 : index
    %c0_120 = arith.constant 0 : index
    %301 = vector.load %arg1[%c21, %c0_120] : memref<24x128xf32, #tpu.memory_space<vmem>>, vector<1x32xf32>
    %302 = vector.broadcast %301 : vector<1x32xf32> to vector<16x32xf32>
    %303 = arith.addf %300, %302 : vector<16x32xf32>
    %304 = arith.addf %278, %303 : vector<16x32xf32>
    %c22 = arith.constant 22 : index
    %c0_121 = arith.constant 0 : index
    %305 = vector.load %arg1[%c22, %c0_121] : memref<24x128xf32, #tpu.memory_space<vmem>>, vector<1x32xf32>
    %c23 = arith.constant 23 : index
    %c0_122 = arith.constant 0 : index
    %306 = vector.load %arg1[%c23, %c0_122] : memref<24x128xf32, #tpu.memory_space<vmem>>, vector<1x32xf32>
    %cst_123 = arith.constant dense<0.000000e+00> : vector<16xf32>
    %307 = vector.multi_reduction <add>, %304, %cst_123 [1] : vector<16x32xf32> to vector<16xf32>
    %308 = vector.shape_cast %307 : vector<16xf32> to vector<16x1xf32>
    %cst_124 = arith.constant 3.200000e+01 : f32
    %309 = vector.broadcast %cst_124 : f32 to vector<16x1xf32>
    %310 = arith.divf %308, %309 : vector<16x1xf32>
    %311 = vector.broadcast %310 : vector<16x1xf32> to vector<16x32xf32>
    %312 = arith.subf %304, %311 : vector<16x32xf32>
    %313 = arith.mulf %312, %312 : vector<16x32xf32>
    %cst_125 = arith.constant dense<0.000000e+00> : vector<16xf32>
    %314 = vector.multi_reduction <add>, %313, %cst_125 [1] : vector<16x32xf32> to vector<16xf32>
    %315 = vector.shape_cast %314 : vector<16xf32> to vector<16x1xf32>
    %cst_126 = arith.constant 3.200000e+01 : f32
    %316 = vector.broadcast %cst_126 : f32 to vector<16x1xf32>
    %317 = arith.divf %315, %316 : vector<16x1xf32>
    %318 = vector.broadcast %310 : vector<16x1xf32> to vector<16x32xf32>
    %319 = arith.subf %304, %318 : vector<16x32xf32>
    %cst_127 = arith.constant 9.99999996E-13 : f32
    %320 = vector.broadcast %cst_127 : f32 to vector<16x1xf32>
    %321 = arith.addf %317, %320 : vector<16x1xf32>
    %322 = math.rsqrt %321 : vector<16x1xf32>
    %323 = vector.broadcast %322 : vector<16x1xf32> to vector<16x32xf32>
    %324 = arith.mulf %319, %323 : vector<16x32xf32>
    %325 = vector.broadcast %305 : vector<1x32xf32> to vector<16x32xf32>
    %326 = arith.mulf %324, %325 : vector<16x32xf32>
    %327 = vector.broadcast %306 : vector<1x32xf32> to vector<16x32xf32>
    %328 = arith.addf %326, %327 : vector<16x32xf32>
    %c8_128 = arith.constant 8 : index
    %c0_129 = arith.constant 0 : index
    %329 = vector.load %arg3[%c8_128, %c0_129] : memref<24x128xf32, #tpu.memory_space<vmem>>, vector<16x32xf32>
    tpu.vector_store %arg3[%c8_128, %c0_129], %328 {strides = array<i32>} : memref<24x128xf32, #tpu.memory_space<vmem>>, vector<16x32xf32>,
    return
  }
}

</mosaic_0001>

<llo_original>
// kernel: forward.1
$region0: #{forward.1}
  #allocation0 [shape = 'u32[]', space=smem, size = 0x4, offset = 0x4, fixed_abs, tag = 'smem constant byte address 0x4 - core index']
  #allocation1 [shape = 'u32[144,128]{1,0:T(1,128)}', space=vmem, size = 0x12000, scoped, tag = 'internal scratch']
  %s0 = inlined_call_operand.vmem [shape: bf16[272,128], index: 0, kind: input, shape index: {}]
  %s1 = inlined_call_operand.vmem [shape: f32[24,128], index: 1, kind: input, shape index: {}]
  %s2 = inlined_call_operand.vmem [shape: f32[40,128], index: 2, kind: input, shape index: {}]
  %s3 = inlined_call_operand.vmem [shape: f32[24,128], index: 3, kind: output, shape index: {}]
  %s4 = sld [smem:[#allocation0]]
  $region22: #{forward.1} parent=0
    _
  %s6 = ssub.s32 1, %s4
  %s7 = scalar_select 0, %s6, %s4
  // Predicated region
  $region2: #{forward.1} parent=0 // pred_check
    _
  $region3: #{forward.1} parent=0 // pred_check_branch
    %9 = sbr.rel (0) target = $region5
  $region4: #{forward.1} parent=0 // pred_region
    _
  $region5: #{forward.1} parent=0 // pred_fallthru
    _
  // Predicated region
  $region6: #{forward.1} parent=0 // pred_check
    _
  $region7: #{forward.1} parent=0 // pred_check_branch
    %11 = sbr.rel (0) target = $region9
  $region8: #{forward.1} parent=0 // pred_region
    _
  $region9: #{forward.1} parent=0 // pred_fallthru
    _
  // Predicated region
  $region10: #{forward.1} parent=0 // pred_check
    _
  $region11: #{forward.1} parent=0 // pred_check_branch
    %13 = sbr.rel (0) target = $region13
  $region12: #{forward.1} parent=0 // pred_region
    _
  $region13: #{forward.1} parent=0 // pred_fallthru
    _
  %15 = vst [vmem:[%s3] sm:$0xff] 0.0
  %16 = vst [vmem:[%s3 + $0x8] sm:$0xff] 0.0
  %17 = vst [vmem:[%s3 + $0x10] sm:$0xff] 0.0
  %v18 = vld [vmem:[%s2] sm:$0xff]
  %v19 = vld [vmem:[%s2 + $0x8] sm:$0xff]
  %v20 = vpack.c.bf16 %v19, %v18
  %v21 = vld [vmem:[%s2 + $0x10] sm:$0x3]
  %v22 = vld [vmem:[%s0] sm:$0xf]
  %v23 = vld [vmem:[%s0 + $0x4] sm:$0xf]
  %v26 = vunpack.c.l.b16 %v22
  %v27 = vunpack.c.l.b16 %v23
  %v28 = vpack.c.b16 %v27, %v26
  %vm30 = vcmask 130048
  %v32 = vsel %vm30, %v20, 0
  %34 = vmatprep.subr.bf16.mxu0 0
  %35 = vmatpush1.bf16.msra.mxu0 0
  %36 = vmatprep.subr.bf16.mxu0 0
  %37 = vmatpush1.bf16.msra.mxu0 0
  %38 = vmatprep.subr.bf16.mxu0 0
  %39 = vmatpush1.bf16.msra.mxu0 0
  %40 = vmatprep.subr.bf16.mxu0 0
  %41 = vmatpush1.bf16.msra.mxu0 0
  %42 = vmatprep.subr.bf16.mxu0 0
  %43 = vmatpush1.bf16.msra.mxu0 0
  %44 = vmatprep.subr.bf16.mxu0 0
  %45 = vmatpush1.bf16.msra.mxu0 0
  %46 = vmatprep.subr.bf16.mxu0 0
  %47 = vmatpush1.bf16.msra.mxu0 0
  %48 = vmatprep.subr.bf16.mxu0 0
  %49 = vmatpush1.bf16.msra.mxu0 %v28
  %50 = vmatprep.subr.bf16.mxu0 0
  %51 = vmatpush2.bf16.msra.mxu0 0
  %52 = vmatprep.subr.bf16.mxu0 0
  %53 = vmatpush2.bf16.msra.mxu0 0
  %54 = vmatprep.subr.bf16.mxu0 0
  %55 = vmatpush2.bf16.msra.mxu0 0
  %56 = vmatprep.subr.bf16.mxu0 0
  %57 = vmatpush2.bf16.msra.mxu0 0
  %58 = vmatprep.subr.bf16.mxu0 0
  %59 = vmatpush2.bf16.msra.mxu0 0
  %60 = vmatprep.subr.bf16.mxu0 0
  %61 = vmatpush2.bf16.msra.mxu0 0
  %62 = vmatprep.subr.bf16.mxu0 0
  %63 = vmatpush2.bf16.msra.mxu0 0
  %64 = vmatprep.subr.bf16.mxu0 0
  %65 = vmatpush2.bf16.msra.mxu0 0
  %66 = vmatprep.mubr.bf16.mxu0 0
  %67 = vmatmul.mubr.bf16.gmra.mxu0 %v32
  %v68 = vpop.f32.mrf.mxu0
  %v69 = vadd.f32 0.0, %v68
  %v70 = vpop.f32.mrf.mxu0
  %v71 = vpop.f32.mrf.mxu0
  %v72 = vadd.f32 0.0, %v71
  %v73 = vpop.f32.mrf.mxu0
  %74 = vdwg.mxu0
  %v75 = vpack.c.bf16 %v72, %v69
  %v76 = vld [vmem:[%s1] sm:$0x1]
  %v77 = vlaneseq
  %v78 = vshrl.u32 %v77, 7
  %v79 = vsub.s32 0, %v78
  %v80 = vrot.slane %v76, %v79
  %82 = vrot.lane.b32.xlu0 %v20, 112
  %v83 = vpop.permute.xlu0 %82
  %v85 = vsel %vm30, %v83, 0
  %87 = vmatprep.subr.bf16.mxu0 0
  %88 = vmatpush1.bf16.msra.mxu0 0
  %89 = vmatprep.subr.bf16.mxu0 0
  %90 = vmatpush1.bf16.msra.mxu0 0
  %91 = vmatprep.subr.bf16.mxu0 0
  %92 = vmatpush1.bf16.msra.mxu0 0
  %93 = vmatprep.subr.bf16.mxu0 0
  %94 = vmatpush1.bf16.msra.mxu0 0
  %95 = vmatprep.subr.bf16.mxu0 0
  %96 = vmatpush1.bf16.msra.mxu0 0
  %97 = vmatprep.subr.bf16.mxu0 0
  %98 = vmatpush1.bf16.msra.mxu0 0
  %99 = vmatprep.subr.bf16.mxu0 0
  %100 = vmatpush1.bf16.msra.mxu0 0
  %101 = vmatprep.subr.bf16.mxu0 0
  %102 = vmatpush1.bf16.msra.mxu0 %v75
  %103 = vmatprep.subr.bf16.mxu0 0
  %104 = vmatpush2.bf16.msra.mxu0 0
  %105 = vmatprep.subr.bf16.mxu0 0
  %106 = vmatpush2.bf16.msra.mxu0 0
  %107 = vmatprep.subr.bf16.mxu0 0
  %108 = vmatpush2.bf16.msra.mxu0 0
  %109 = vmatprep.subr.bf16.mxu0 0
  %110 = vmatpush2.bf16.msra.mxu0 0
  %111 = vmatprep.subr.bf16.mxu0 0
  %112 = vmatpush2.bf16.msra.mxu0 0
  %113 = vmatprep.subr.bf16.mxu0 0
  %114 = vmatpush2.bf16.msra.mxu0 0
  %115 = vmatprep.subr.bf16.mxu0 0
  %116 = vmatpush2.bf16.msra.mxu0 0
  %117 = vmatprep.subr.bf16.mxu0 0
  %118 = vmatpush2.bf16.msra.mxu0 0
  %119 = vmatprep.mubr.bf16.mxu0 0
  %120 = vmatmul.mubr.bf16.gmra.mxu0 %v85
  %v121 = vpop.f32.mrf.mxu0
  %v122 = vadd.f32 %v80, %v121
  %v123 = vpop.f32.mrf.mxu0
  %v124 = vpop.f32.mrf.mxu0
  %v125 = vadd.f32 %v80, %v124
  %v126 = vpop.f32.mrf.mxu0
  %127 = vdwg.mxu0
  %v128 = vld [vmem:[%s1 + $0x1] sm:$0x1]
  %v129 = vld [vmem:[%s1 + $0x2] sm:$0x1]
  %v131 = vsel %vm30, 1.0, 0
  %133 = vmatprep.subr.mxu0 0.0
  %134 = vmatpush1.msra.mxu0 0.0
  %135 = vmatprep.subr.mxu0 0.0
  %136 = vmatpush1.msra.mxu0 0.0
  %137 = vmatprep.subr.mxu0 0.0
  %138 = vmatpush1.msra.mxu0 0.0
  %139 = vmatprep.subr.mxu0 0.0
  %140 = vmatpush1.msra.mxu0 0.0
  %141 = vmatprep.subr.mxu0 0.0
  %142 = vmatpush1.msra.mxu0 0.0
  %143 = vmatprep.subr.mxu0 0.0
  %144 = vmatpush1.msra.mxu0 0.0
  %145 = vmatprep.subr.mxu0 0.0
  %146 = vmatpush1.msra.mxu0 0.0
  %147 = vmatprep.subr.mxu0 0.0
  %148 = vmatpush1.msra.mxu0 0.0
  %149 = vmatprep.subr.mxu0 0.0
  %150 = vmatpush1.msra.mxu0 0.0
  %151 = vmatprep.subr.mxu0 0.0
  %152 = vmatpush1.msra.mxu0 0.0
  %153 = vmatprep.subr.mxu0 0.0
  %154 = vmatpush1.msra.mxu0 0.0
  %155 = vmatprep.subr.mxu0 0.0
  %156 = vmatpush1.msra.mxu0 0.0
  %157 = vmatprep.subr.mxu0 0.0
  %158 = vmatpush1.msra.mxu0 0.0
  %159 = vmatprep.subr.mxu0 0.0
  %160 = vmatpush1.msra.mxu0 0.0
  %161 = vmatprep.subr.mxu0 0.0
  %162 = vmatpush1.msra.mxu0 %v125
  %163 = vmatprep.subr.mxu0 0.0
  %164 = vmatpush1.msra.mxu0 %v122
  %165 = vmatprep.subr.mxu0 0.0
  %166 = vmatpush2.msra.mxu0 0.0
  %167 = vmatprep.subr.mxu0 0.0
  %168 = vmatpush2.msra.mxu0 0.0
  %169 = vmatprep.subr.mxu0 0.0
  %170 = vmatpush2.msra.mxu0 0.0
  %171 = vmatprep.subr.mxu0 0.0
  %172 = vmatpush2.msra.mxu0 0.0
  %173 = vmatprep.subr.mxu0 0.0
  %174 = vmatpush2.msra.mxu0 0.0
  %175 = vmatprep.subr.mxu0 0.0
  %176 = vmatpush2.msra.mxu0 0.0
  %177 = vmatprep.subr.mxu0 0.0
  %178 = vmatpush2.msra.mxu0 0.0
  %179 = vmatprep.subr.mxu0 0.0
  %180 = vmatpush2.msra.mxu0 0.0
  %181 = vmatprep.subr.mxu0 0.0
  %182 = vmatpush2.msra.mxu0 0.0
  %183 = vmatprep.subr.mxu0 0.0
  %184 = vmatpush2.msra.mxu0 0.0
  %185 = vmatprep.subr.mxu0 0.0
  %186 = vmatpush2.msra.mxu0 0.0
  %187 = vmatprep.subr.mxu0 0.0
  %188 = vmatpush2.msra.mxu0 0.0
  %189 = vmatprep.subr.mxu0 0.0
  %190 = vmatpush2.msra.mxu0 0.0
  %191 = vmatprep.subr.mxu0 0.0
  %192 = vmatpush2.msra.mxu0 0.0
  %193 = vmatprep.subr.mxu0 0.0
  %194 = vmatpush2.msra.mxu0 0.0
  %195 = vmatprep.subr.mxu0 0.0
  %196 = vmatpush2.msra.mxu0 0.0
  %197 = vmatprep.mubr.f32.mxu0 0.0
  %198 = vmatmul.mubr.f32.gmra.mxu0 %v131
  %v199 = vpop.f32.mrf.mxu0
  %v200 = vadd.f32 0.0, %v199
  %v201 = vpop.f32.mrf.mxu0
  %202 = vdwg.mxu0
  %v203 = vmul.f32 %v200, 0.0625
  %v204 = vmul.f32 %v122, %v122
  %v205 = vmul.f32 %v125, %v125
  %206 = vmatprep.subr.mxu0 0.0
  %207 = vmatpush1.msra.mxu0 0.0
  %208 = vmatprep.subr.mxu0 0.0
  %209 = vmatpush1.msra.mxu0 0.0
  %210 = vmatprep.subr.mxu0 0.0
  %211 = vmatpush1.msra.mxu0 0.0
  %212 = vmatprep.subr.mxu0 0.0
  %213 = vmatpush1.msra.mxu0 0.0
  %214 = vmatprep.subr.mxu0 0.0
  %215 = vmatpush1.msra.mxu0 0.0
  %216 = vmatprep.subr.mxu0 0.0
  %217 = vmatpush1.msra.mxu0 0.0
  %218 = vmatprep.subr.mxu0 0.0
  %219 = vmatpush1.msra.mxu0 0.0
  %220 = vmatprep.subr.mxu0 0.0
  %221 = vmatpush1.msra.mxu0 0.0
  %222 = vmatprep.subr.mxu0 0.0
  %223 = vmatpush1.msra.mxu0 0.0
  %224 = vmatprep.subr.mxu0 0.0
  %225 = vmatpush1.msra.mxu0 0.0
  %226 = vmatprep.subr.mxu0 0.0
  %227 = vmatpush1.msra.mxu0 0.0
  %228 = vmatprep.subr.mxu0 0.0
  %229 = vmatpush1.msra.mxu0 0.0
  %230 = vmatprep.subr.mxu0 0.0
  %231 = vmatpush1.msra.mxu0 0.0
  %232 = vmatprep.subr.mxu0 0.0
  %233 = vmatpush1.msra.mxu0 0.0
  %234 = vmatprep.subr.mxu0 0.0
  %235 = vmatpush1.msra.mxu0 %v205
  %236 = vmatprep.subr.mxu0 0.0
  %237 = vmatpush1.msra.mxu0 %v204
  %238 = vmatprep.subr.mxu0 0.0
  %239 = vmatpush2.msra.mxu0 0.0
  %240 = vmatprep.subr.mxu0 0.0
  %241 = vmatpush2.msra.mxu0 0.0
  %242 = vmatprep.subr.mxu0 0.0
  %243 = vmatpush2.msra.mxu0 0.0
  %244 = vmatprep.subr.mxu0 0.0
  %245 = vmatpush2.msra.mxu0 0.0
  %246 = vmatprep.subr.mxu0 0.0
  %247 = vmatpush2.msra.mxu0 0.0
  %248 = vmatprep.subr.mxu0 0.0
  %249 = vmatpush2.msra.mxu0 0.0
  %250 = vmatprep.subr.mxu0 0.0
  %251 = vmatpush2.msra.mxu0 0.0
  %252 = vmatprep.subr.mxu0 0.0
  %253 = vmatpush2.msra.mxu0 0.0
  %254 = vmatprep.subr.mxu0 0.0
  %255 = vmatpush2.msra.mxu0 0.0
  %256 = vmatprep.subr.mxu0 0.0
  %257 = vmatpush2.msra.mxu0 0.0
  %258 = vmatprep.subr.mxu0 0.0
  %259 = vmatpush2.msra.mxu0 0.0
  %260 = vmatprep.subr.mxu0 0.0
  %261 = vmatpush2.msra.mxu0 0.0
  %262 = vmatprep.subr.mxu0 0.0
  %263 = vmatpush2.msra.mxu0 0.0
  %264 = vmatprep.subr.mxu0 0.0
  %265 = vmatpush2.msra.mxu0 0.0
  %266 = vmatprep.subr.mxu0 0.0
  %267 = vmatpush2.msra.mxu0 0.0
  %268 = vmatprep.subr.mxu0 0.0
  %269 = vmatpush2.msra.mxu0 0.0
  %270 = vmatprep.mubr.f32.mxu0 0.0
  %271 = vmatmul.mubr.f32.gmra.mxu0 %v131
  %v272 = vpop.f32.mrf.mxu0
  %v273 = vadd.f32 0.0, %v272
  %v274 = vpop.f32.mrf.mxu0
  %275 = vdwg.mxu0
  %v276 = vmul.f32 %v273, 0.0625
  %v277 = vmul.f32 %v203, %v203
  %v278 = vsub.f32 %v276, %v277
  %v279 = vmax.f32 %v278, 0.0
  %v280 = vlaneseq
  %v281 = vshrl.u32 %v280, 7
  %v282 = vsub.s32 0, %v281
  %v283 = vrot.slane %v203, %v282
  %v284 = vsub.f32 %v122, %v283
  %v285 = vsub.f32 %v125, %v283
  %v286 = vadd.f32 %v279, 1e-05
  %v287 = vrsqrt.pop %v286
  %v288 = vlaneseq
  %v289 = vshrl.u32 %v288, 7
  %v290 = vsub.s32 0, %v289
  %v291 = vrot.slane %v287, %v290
  %v292 = vmul.f32 %v284, %v291
  %v293 = vmul.f32 %v285, %v291
  %v294 = vlaneseq
  %v295 = vshrl.u32 %v294, 7
  %v296 = vsub.s32 0, %v295
  %v297 = vrot.slane %v128, %v296
  %v298 = vmul.f32 %v292, %v297
  %v299 = vmul.f32 %v293, %v297
  %v300 = vlaneseq
  %v301 = vshrl.u32 %v300, 7
  %v302 = vsub.s32 0, %v301
  %v303 = vrot.slane %v129, %v302
  %v304 = vadd.f32 %v298, %v303
  %v305 = vadd.f32 %v299, %v303
  %v306 = vmax.f32 %v304, 0.0
  %v307 = vmax.f32 %v305, 0.0
  %v308 = vadd.f32 %v306, %v18
  %v309 = vadd.f32 %v307, %v19
  %v310 = vpack.c.bf16 %v309, %v308
  %v311 = vld [vmem:[%s0 + $0x8] sm:$0xf]
  %v312 = vld [vmem:[%s0 + $0xc] sm:$0xf]
  %v315 = vunpack.c.l.b16 %v311
  %v316 = vunpack.c.l.b16 %v312
  %v317 = vpack.c.b16 %v316, %v315
  %v320 = vsel %vm30, %v310, 0
  %322 = vmatprep.subr.bf16.mxu0 0
  %323 = vmatpush1.bf16.msra.mxu0 0
  %324 = vmatprep.subr.bf16.mxu0 0
  %325 = vmatpush1.bf16.msra.mxu0 0
  %326 = vmatprep.subr.bf16.mxu0 0
  %327 = vmatpush1.bf16.msra.mxu0 0
  %328 = vmatprep.subr.bf16.mxu0 0
  %329 = vmatpush1.bf16.msra.mxu0 0
  %330 = vmatprep.subr.bf16.mxu0 0
  %331 = vmatpush1.bf16.msra.mxu0 0
  %332 = vmatprep.subr.bf16.mxu0 0
  %333 = vmatpush1.bf16.msra.mxu0 0
  %334 = vmatprep.subr.bf16.mxu0 0
  %335 = vmatpush1.bf16.msra.mxu0 0
  %336 = vmatprep.subr.bf16.mxu0 0
  %337 = vmatpush1.bf16.msra.mxu0 %v317
  %338 = vmatprep.subr.bf16.mxu0 0
  %339 = vmatpush2.bf16.msra.mxu0 0
  %340 = vmatprep.subr.bf16.mxu0 0
  %341 = vmatpush2.bf16.msra.mxu0 0
  %342 = vmatprep.subr.bf16.mxu0 0
  %343 = vmatpush2.bf16.msra.mxu0 0
  %344 = vmatprep.subr.bf16.mxu0 0
  %345 = vmatpush2.bf16.msra.mxu0 0
  %346 = vmatprep.subr.bf16.mxu0 0
  %347 = vmatpush2.bf16.msra.mxu0 0
  %348 = vmatprep.subr.bf16.mxu0 0
  %349 = vmatpush2.bf16.msra.mxu0 0
  %350 = vmatprep.subr.bf16.mxu0 0
  %351 = vmatpush2.bf16.msra.mxu0 0
  %352 = vmatprep.subr.bf16.mxu0 0
  %353 = vmatpush2.bf16.msra.mxu0 0
  %354 = vmatprep.mubr.bf16.mxu0 0
  %355 = vmatmul.mubr.bf16.gmra.mxu0 %v320
  %v356 = vpop.f32.mrf.mxu0
  %v357 = vadd.f32 0.0, %v356
  %v358 = vpop.f32.mrf.mxu0
  %v359 = vpop.f32.mrf.mxu0
  %v360 = vadd.f32 0.0, %v359
  %v361 = vpop.f32.mrf.mxu0
  %362 = vdwg.mxu0
  %v363 = vpack.c.bf16 %v360, %v357
  %v364 = vld [vmem:[%s1 + $0x3] sm:$0x1]
  %v365 = vlaneseq
  %v366 = vshrl.u32 %v365, 7
  %v367 = vsub.s32 0, %v366
  %v368 = vrot.slane %v364, %v367
  %369 = vmatprep.subr.bf16.mxu0 0
  %370 = vmatpush1.bf16.msra.mxu0 0
  %371 = vmatprep.subr.bf16.mxu0 0
  %372 = vmatpush1.bf16.msra.mxu0 0
  %373 = vmatprep.subr.bf16.mxu0 0
  %374 = vmatpush1.bf16.msra.mxu0 0
  %375 = vmatprep.subr.bf16.mxu0 0
  %376 = vmatpush1.bf16.msra.mxu0 0
  %377 = vmatprep.subr.bf16.mxu0 0
  %378 = vmatpush1.bf16.msra.mxu0 0
  %379 = vmatprep.subr.bf16.mxu0 0
  %380 = vmatpush1.bf16.msra.mxu0 0
  %381 = vmatprep.subr.bf16.mxu0 0
  %382 = vmatpush1.bf16.msra.mxu0 0
  %383 = vmatprep.subr.bf16.mxu0 0
  %384 = vmatpush1.bf16.msra.mxu0 %v363
  %385 = vmatprep.subr.bf16.mxu0 0
  %386 = vmatpush2.bf16.msra.mxu0 0
  %387 = vmatprep.subr.bf16.mxu0 0
  %388 = vmatpush2.bf16.msra.mxu0 0
  %389 = vmatprep.subr.bf16.mxu0 0
  %390 = vmatpush2.bf16.msra.mxu0 0
  %391 = vmatprep.subr.bf16.mxu0 0
  %392 = vmatpush2.bf16.msra.mxu0 0
  %393 = vmatprep.subr.bf16.mxu0 0
  %394 = vmatpush2.bf16.msra.mxu0 0
  %395 = vmatprep.subr.bf16.mxu0 0
  %396 = vmatpush2.bf16.msra.mxu0 0
  %397 = vmatprep.subr.bf16.mxu0 0
  %398 = vmatpush2.bf16.msra.mxu0 0
  %399 = vmatprep.subr.bf16.mxu0 0
  %400 = vmatpush2.bf16.msra.mxu0 0
  %401 = vmatprep.mubr.bf16.mxu0 0
  %402 = vmatmul.mubr.bf16.gmra.mxu0 %v85
  %v403 = vpop.f32.mrf.mxu0
  %v404 = vadd.f32 %v368, %v403
  %v405 = vpop.f32.mrf.mxu0
  %v406 = vpop.f32.mrf.mxu0
  %v407 = vadd.f32 %v368, %v406
  %v408 = vpop.f32.mrf.mxu0
  %409 = vdwg.mxu0
  %v410 = vld [vmem:[%s1 + $0x4] sm:$0x1]
  %v411 = vld [vmem:[%s1 + $0x5] sm:$0x1]
  %412 = vmatprep.subr.mxu0 0.0
  %413 = vmatpush1.msra.mxu0 0.0
  %414 = vmatprep.subr.mxu0 0.0
  %415 = vmatpush1.msra.mxu0 0.0
  %416 = vmatprep.subr.mxu0 0.0
  %417 = vmatpush1.msra.mxu0 0.0
  %418 = vmatprep.subr.mxu0 0.0
  %419 = vmatpush1.msra.mxu0 0.0
  %420 = vmatprep.subr.mxu0 0.0
  %421 = vmatpush1.msra.mxu0 0.0
  %422 = vmatprep.subr.mxu0 0.0
  %423 = vmatpush1.msra.mxu0 0.0
  %424 = vmatprep.subr.mxu0 0.0
  %425 = vmatpush1.msra.mxu0 0.0
  %426 = vmatprep.subr.mxu0 0.0
  %427 = vmatpush1.msra.mxu0 0.0
  %428 = vmatprep.subr.mxu0 0.0
  %429 = vmatpush1.msra.mxu0 0.0
  %430 = vmatprep.subr.mxu0 0.0
  %431 = vmatpush1.msra.mxu0 0.0
  %432 = vmatprep.subr.mxu0 0.0
  %433 = vmatpush1.msra.mxu0 0.0
  %434 = vmatprep.subr.mxu0 0.0
  %435 = vmatpush1.msra.mxu0 0.0
  %436 = vmatprep.subr.mxu0 0.0
  %437 = vmatpush1.msra.mxu0 0.0
  %438 = vmatprep.subr.mxu0 0.0
  %439 = vmatpush1.msra.mxu0 0.0
  %440 = vmatprep.subr.mxu0 0.0
  %441 = vmatpush1.msra.mxu0 %v407
  %442 = vmatprep.subr.mxu0 0.0
  %443 = vmatpush1.msra.mxu0 %v404
  %444 = vmatprep.subr.mxu0 0.0
  %445 = vmatpush2.msra.mxu0 0.0
  %446 = vmatprep.subr.mxu0 0.0
  %447 = vmatpush2.msra.mxu0 0.0
  %448 = vmatprep.subr.mxu0 0.0
  %449 = vmatpush2.msra.mxu0 0.0
  %450 = vmatprep.subr.mxu0 0.0
  %451 = vmatpush2.msra.mxu0 0.0
  %452 = vmatprep.subr.mxu0 0.0
  %453 = vmatpush2.msra.mxu0 0.0
  %454 = vmatprep.subr.mxu0 0.0
  %455 = vmatpush2.msra.mxu0 0.0
  %456 = vmatprep.subr.mxu0 0.0
  %457 = vmatpush2.msra.mxu0 0.0
  %458 = vmatprep.subr.mxu0 0.0
  %459 = vmatpush2.msra.mxu0 0.0
  %460 = vmatprep.subr.mxu0 0.0
  %461 = vmatpush2.msra.mxu0 0.0
  %462 = vmatprep.subr.mxu0 0.0
  %463 = vmatpush2.msra.mxu0 0.0
  %464 = vmatprep.subr.mxu0 0.0
  %465 = vmatpush2.msra.mxu0 0.0
  %466 = vmatprep.subr.mxu0 0.0
  %467 = vmatpush2.msra.mxu0 0.0
  %468 = vmatprep.subr.mxu0 0.0
  %469 = vmatpush2.msra.mxu0 0.0
  %470 = vmatprep.subr.mxu0 0.0
  %471 = vmatpush2.msra.mxu0 0.0
  %472 = vmatprep.subr.mxu0 0.0
  %473 = vmatpush2.msra.mxu0 0.0
  %474 = vmatprep.subr.mxu0 0.0
  %475 = vmatpush2.msra.mxu0 0.0
  %476 = vmatprep.mubr.f32.mxu0 0.0
  %477 = vmatmul.mubr.f32.gmra.mxu0 %v131
  %v478 = vpop.f32.mrf.mxu0
  %v479 = vadd.f32 0.0, %v478
  %v480 = vpop.f32.mrf.mxu0
  %481 = vdwg.mxu0
  %v482 = vmul.f32 %v479, 0.0625
  %v483 = vmul.f32 %v404, %v404
  %v484 = vmul.f32 %v407, %v407
  %485 = vmatprep.subr.mxu0 0.0
  %486 = vmatpush1.msra.mxu0 0.0
  %487 = vmatprep.subr.mxu0 0.0
  %488 = vmatpush1.msra.mxu0 0.0
  %489 = vmatprep.subr.mxu0 0.0
  %490 = vmatpush1.msra.mxu0 0.0
  %491 = vmatprep.subr.mxu0 0.0
  %492 = vmatpush1.msra.mxu0 0.0
  %493 = vmatprep.subr.mxu0 0.0
  %494 = vmatpush1.msra.mxu0 0.0
  %495 = vmatprep.subr.mxu0 0.0
  %496 = vmatpush1.msra.mxu0 0.0
  %497 = vmatprep.subr.mxu0 0.0
  %498 = vmatpush1.msra.mxu0 0.0
  %499 = vmatprep.subr.mxu0 0.0
  %500 = vmatpush1.msra.mxu0 0.0
  %501 = vmatprep.subr.mxu0 0.0
  %502 = vmatpush1.msra.mxu0 0.0
  %503 = vmatprep.subr.mxu0 0.0
  %504 = vmatpush1.msra.mxu0 0.0
  %505 = vmatprep.subr.mxu0 0.0
  %506 = vmatpush1.msra.mxu0 0.0
  %507 = vmatprep.subr.mxu0 0.0
  %508 = vmatpush1.msra.mxu0 0.0
  %509 = vmatprep.subr.mxu0 0.0
  %510 = vmatpush1.msra.mxu0 0.0
  %511 = vmatprep.subr.mxu0 0.0
  %512 = vmatpush1.msra.mxu0 0.0
  %513 = vmatprep.subr.mxu0 0.0
  %514 = vmatpush1.msra.mxu0 %v484
  %515 = vmatprep.subr.mxu0 0.0
  %516 = vmatpush1.msra.mxu0 %v483
  %517 = vmatprep.subr.mxu0 0.0
  %518 = vmatpush2.msra.mxu0 0.0
  %519 = vmatprep.subr.mxu0 0.0
  %520 = vmatpush2.msra.mxu0 0.0
  %521 = vmatprep.subr.mxu0 0.0
  %522 = vmatpush2.msra.mxu0 0.0
  %523 = vmatprep.subr.mxu0 0.0
  %524 = vmatpush2.msra.mxu0 0.0
  %525 = vmatprep.subr.mxu0 0.0
  %526 = vmatpush2.msra.mxu0 0.0
  %527 = vmatprep.subr.mxu0 0.0
  %528 = vmatpush2.msra.mxu0 0.0
  %529 = vmatprep.subr.mxu0 0.0
  %530 = vmatpush2.msra.mxu0 0.0
  %531 = vmatprep.subr.mxu0 0.0
  %532 = vmatpush2.msra.mxu0 0.0
  %533 = vmatprep.subr.mxu0 0.0
  %534 = vmatpush2.msra.mxu0 0.0
  %535 = vmatprep.subr.mxu0 0.0
  %536 = vmatpush2.msra.mxu0 0.0
  %537 = vmatprep.subr.mxu0 0.0
  %538 = vmatpush2.msra.mxu0 0.0
  %539 = vmatprep.subr.mxu0 0.0
  %540 = vmatpush2.msra.mxu0 0.0
  %541 = vmatprep.subr.mxu0 0.0
  %542 = vmatpush2.msra.mxu0 0.0
  %543 = vmatprep.subr.mxu0 0.0
  %544 = vmatpush2.msra.mxu0 0.0
  %545 = vmatprep.subr.mxu0 0.0
  %546 = vmatpush2.msra.mxu0 0.0
  %547 = vmatprep.subr.mxu0 0.0
  %548 = vmatpush2.msra.mxu0 0.0
  %549 = vmatprep.mubr.f32.mxu0 0.0
  %550 = vmatmul.mubr.f32.gmra.mxu0 %v131
  %v551 = vpop.f32.mrf.mxu0
  %v552 = vadd.f32 0.0, %v551
  %v553 = vpop.f32.mrf.mxu0
  %554 = vdwg.mxu0
  %v555 = vmul.f32 %v552, 0.0625
  %v556 = vmul.f32 %v482, %v482
  %v557 = vsub.f32 %v555, %v556
  %v558 = vmax.f32 %v557, 0.0
  %v559 = vlaneseq
  %v560 = vshrl.u32 %v559, 7
  %v561 = vsub.s32 0, %v560
  %v562 = vrot.slane %v482, %v561
  %v563 = vsub.f32 %v404, %v562
  %v564 = vsub.f32 %v407, %v562
  %v565 = vadd.f32 %v558, 1e-05
  %v566 = vrsqrt.pop %v565
  %v567 = vlaneseq
  %v568 = vshrl.u32 %v567, 7
  %v569 = vsub.s32 0, %v568
  %v570 = vrot.slane %v566, %v569
  %v571 = vmul.f32 %v563, %v570
  %v572 = vmul.f32 %v564, %v570
  %v573 = vlaneseq
  %v574 = vshrl.u32 %v573, 7
  %v575 = vsub.s32 0, %v574
  %v576 = vrot.slane %v410, %v575
  %v577 = vmul.f32 %v571, %v576
  %v578 = vmul.f32 %v572, %v576
  %v579 = vlaneseq
  %v580 = vshrl.u32 %v579, 7
  %v581 = vsub.s32 0, %v580
  %v582 = vrot.slane %v411, %v581
  %v583 = vadd.f32 %v577, %v582
  %v584 = vadd.f32 %v578, %v582
  %v585 = vmax.f32 %v583, 0.0
  %v586 = vmax.f32 %v584, 0.0
  %v587 = vadd.f32 %v585, %v308
  %v588 = vadd.f32 %v586, %v309
  %v589 = vpack.c.bf16 %v588, %v587
  %v590 = vld [vmem:[%s0 + $0x10] sm:$0xf]
  %v591 = vld [vmem:[%s0 + $0x14] sm:$0xf]
  %v594 = vunpack.c.l.b16 %v590
  %v595 = vunpack.c.l.b16 %v591
  %v596 = vpack.c.b16 %v595, %v594
  %v599 = vsel %vm30, %v589, 0
  %601 = vmatprep.subr.bf16.mxu0 0
  %602 = vmatpush1.bf16.msra.mxu0 0
  %603 = vmatprep.subr.bf16.mxu0 0
  %604 = vmatpush1.bf16.msra.mxu0 0
  %605 = vmatprep.subr.bf16.mxu0 0
  %606 = vmatpush1.bf16.msra.mxu0 0
  %607 = vmatprep.subr.bf16.mxu0 0
  %608 = vmatpush1.bf16.msra.mxu0 0
  %609 = vmatprep.subr.bf16.mxu0 0
  %610 = vmatpush1.bf16.msra.mxu0 0
  %611 = vmatprep.subr.bf16.mxu0 0
  %612 = vmatpush1.bf16.msra.mxu0 0
  %613 = vmatprep.subr.bf16.mxu0 0
  %614 = vmatpush1.bf16.msra.mxu0 0
  %615 = vmatprep.subr.bf16.mxu0 0
  %616 = vmatpush1.bf16.msra.mxu0 %v596
  %617 = vmatprep.subr.bf16.mxu0 0
  %618 = vmatpush2.bf16.msra.mxu0 0
  %619 = vmatprep.subr.bf16.mxu0 0
  %620 = vmatpush2.bf16.msra.mxu0 0
  %621 = vmatprep.subr.bf16.mxu0 0
  %622 = vmatpush2.bf16.msra.mxu0 0
  %623 = vmatprep.subr.bf16.mxu0 0
  %624 = vmatpush2.bf16.msra.mxu0 0
  %625 = vmatprep.subr.bf16.mxu0 0
  %626 = vmatpush2.bf16.msra.mxu0 0
  %627 = vmatprep.subr.bf16.mxu0 0
  %628 = vmatpush2.bf16.msra.mxu0 0
  %629 = vmatprep.subr.bf16.mxu0 0
  %630 = vmatpush2.bf16.msra.mxu0 0
  %631 = vmatprep.subr.bf16.mxu0 0
  %632 = vmatpush2.bf16.msra.mxu0 0
  %633 = vmatprep.mubr.bf16.mxu0 0
  %634 = vmatmul.mubr.bf16.gmra.mxu0 %v599
  %v635 = vpop.f32.mrf.mxu0
  %v636 = vadd.f32 0.0, %v635
  %v637 = vpop.f32.mrf.mxu0
  %v638 = vpop.f32.mrf.mxu0
  %v639 = vadd.f32 0.0, %v638
  %v640 = vpop.f32.mrf.mxu0
  %641 = vdwg.mxu0
  %v642 = vpack.c.bf16 %v639, %v636
  %v643 = vld [vmem:[%s1 + $0x6] sm:$0x1]
  %v644 = vlaneseq
  %v645 = vshrl.u32 %v644, 7
  %v646 = vsub.s32 0, %v645
  %v647 = vrot.slane %v643, %v646
  %648 = vmatprep.subr.bf16.mxu0 0
  %649 = vmatpush1.bf16.msra.mxu0 0
  %650 = vmatprep.subr.bf16.mxu0 0
  %651 = vmatpush1.bf16.msra.mxu0 0
  %652 = vmatprep.subr.bf16.mxu0 0
  %653 = vmatpush1.bf16.msra.mxu0 0
  %654 = vmatprep.subr.bf16.mxu0 0
  %655 = vmatpush1.bf16.msra.mxu0 0
  %656 = vmatprep.subr.bf16.mxu0 0
  %657 = vmatpush1.bf16.msra.mxu0 0
  %658 = vmatprep.subr.bf16.mxu0 0
  %659 = vmatpush1.bf16.msra.mxu0 0
  %660 = vmatprep.subr.bf16.mxu0 0
  %661 = vmatpush1.bf16.msra.mxu0 0
  %662 = vmatprep.subr.bf16.mxu0 0
  %663 = vmatpush1.bf16.msra.mxu0 %v642
  %664 = vmatprep.subr.bf16.mxu0 0
  %665 = vmatpush2.bf16.msra.mxu0 0
  %666 = vmatprep.subr.bf16.mxu0 0
  %667 = vmatpush2.bf16.msra.mxu0 0
  %668 = vmatprep.subr.bf16.mxu0 0
  %669 = vmatpush2.bf16.msra.mxu0 0
  %670 = vmatprep.subr.bf16.mxu0 0
  %671 = vmatpush2.bf16.msra.mxu0 0
  %672 = vmatprep.subr.bf16.mxu0 0
  %673 = vmatpush2.bf16.msra.mxu0 0
  %674 = vmatprep.subr.bf16.mxu0 0
  %675 = vmatpush2.bf16.msra.mxu0 0
  %676 = vmatprep.subr.bf16.mxu0 0
  %677 = vmatpush2.bf16.msra.mxu0 0
  %678 = vmatprep.subr.bf16.mxu0 0
  %679 = vmatpush2.bf16.msra.mxu0 0
  %680 = vmatprep.mubr.bf16.mxu0 0
  %681 = vmatmul.mubr.bf16.gmra.mxu0 %v85
  %v682 = vpop.f32.mrf.mxu0
  %v683 = vadd.f32 %v647, %v682
  %v684 = vpop.f32.mrf.mxu0
  %v685 = vpop.f32.mrf.mxu0
  %v686 = vadd.f32 %v647, %v685
  %v687 = vpop.f32.mrf.mxu0
  %688 = vdwg.mxu0
  %v689 = vld [vmem:[%s1 + $0x7] sm:$0x1]
  %v690 = vld [vmem:[%s1 + $0x8] sm:$0x1]
  %691 = vmatprep.subr.mxu0 0.0
  %692 = vmatpush1.msra.mxu0 0.0
  %693 = vmatprep.subr.mxu0 0.0
  %694 = vmatpush1.msra.mxu0 0.0
  %695 = vmatprep.subr.mxu0 0.0
  %696 = vmatpush1.msra.mxu0 0.0
  %697 = vmatprep.subr.mxu0 0.0
  %698 = vmatpush1.msra.mxu0 0.0
  %699 = vmatprep.subr.mxu0 0.0
  %700 = vmatpush1.msra.mxu0 0.0
  %701 = vmatprep.subr.mxu0 0.0
  %702 = vmatpush1.msra.mxu0 0.0
  %703 = vmatprep.subr.mxu0 0.0
  %704 = vmatpush1.msra.mxu0 0.0
  %705 = vmatprep.subr.mxu0 0.0
  %706 = vmatpush1.msra.mxu0 0.0
  %707 = vmatprep.subr.mxu0 0.0
  %708 = vmatpush1.msra.mxu0 0.0
  %709 = vmatprep.subr.mxu0 0.0
  %710 = vmatpush1.msra.mxu0 0.0
  %711 = vmatprep.subr.mxu0 0.0
  %712 = vmatpush1.msra.mxu0 0.0
  %713 = vmatprep.subr.mxu0 0.0
  %714 = vmatpush1.msra.mxu0 0.0
  %715 = vmatprep.subr.mxu0 0.0
  %716 = vmatpush1.msra.mxu0 0.0
  %717 = vmatprep.subr.mxu0 0.0
  %718 = vmatpush1.msra.mxu0 0.0
  %719 = vmatprep.subr.mxu0 0.0
  %720 = vmatpush1.msra.mxu0 %v686
  %721 = vmatprep.subr.mxu0 0.0
  %722 = vmatpush1.msra.mxu0 %v683
  %723 = vmatprep.subr.mxu0 0.0
  %724 = vmatpush2.msra.mxu0 0.0
  %725 = vmatprep.subr.mxu0 0.0
  %726 = vmatpush2.msra.mxu0 0.0
  %727 = vmatprep.subr.mxu0 0.0
  %728 = vmatpush2.msra.mxu0 0.0
  %729 = vmatprep.subr.mxu0 0.0
  %730 = vmatpush2.msra.mxu0 0.0
  %731 = vmatprep.subr.mxu0 0.0
  %732 = vmatpush2.msra.mxu0 0.0
  %733 = vmatprep.subr.mxu0 0.0
  %734 = vmatpush2.msra.mxu0 0.0
  %735 = vmatprep.subr.mxu0 0.0
  %736 = vmatpush2.msra.mxu0 0.0
  %737 = vmatprep.subr.mxu0 0.0
  %738 = vmatpush2.msra.mxu0 0.0
  %739 = vmatprep.subr.mxu0 0.0
  %740 = vmatpush2.msra.mxu0 0.0
  %741 = vmatprep.subr.mxu0 0.0
  %742 = vmatpush2.msra.mxu0 0.0
  %743 = vmatprep.subr.mxu0 0.0
  %744 = vmatpush2.msra.mxu0 0.0
  %745 = vmatprep.subr.mxu0 0.0
  %746 = vmatpush2.msra.mxu0 0.0
  %747 = vmatprep.subr.mxu0 0.0
  %748 = vmatpush2.msra.mxu0 0.0
  %749 = vmatprep.subr.mxu0 0.0
  %750 = vmatpush2.msra.mxu0 0.0
  %751 = vmatprep.subr.mxu0 0.0
  %752 = vmatpush2.msra.mxu0 0.0
  %753 = vmatprep.subr.mxu0 0.0
  %754 = vmatpush2.msra.mxu0 0.0
  %755 = vmatprep.mubr.f32.mxu0 0.0
  %756 = vmatmul.mubr.f32.gmra.mxu0 %v131
  %v757 = vpop.f32.mrf.mxu0
  %v758 = vadd.f32 0.0, %v757
  %v759 = vpop.f32.mrf.mxu0
  %760 = vdwg.mxu0
  %v761 = vmul.f32 %v758, 0.0625
  %v762 = vmul.f32 %v683, %v683
  %v763 = vmul.f32 %v686, %v686
  %764 = vmatprep.subr.mxu0 0.0
  %765 = vmatpush1.msra.mxu0 0.0
  %766 = vmatprep.subr.mxu0 0.0
  %767 = vmatpush1.msra.mxu0 0.0
  %768 = vmatprep.subr.mxu0 0.0
  %769 = vmatpush1.msra.mxu0 0.0
  %770 = vmatprep.subr.mxu0 0.0
  %771 = vmatpush1.msra.mxu0 0.0
  %772 = vmatprep.subr.mxu0 0.0
  %773 = vmatpush1.msra.mxu0 0.0
  %774 = vmatprep.subr.mxu0 0.0
  %775 = vmatpush1.msra.mxu0 0.0
  %776 = vmatprep.subr.mxu0 0.0
  %777 = vmatpush1.msra.mxu0 0.0
  %778 = vmatprep.subr.mxu0 0.0
  %779 = vmatpush1.msra.mxu0 0.0
  %780 = vmatprep.subr.mxu0 0.0
  %781 = vmatpush1.msra.mxu0 0.0
  %782 = vmatprep.subr.mxu0 0.0
  %783 = vmatpush1.msra.mxu0 0.0
  %784 = vmatprep.subr.mxu0 0.0
  %785 = vmatpush1.msra.mxu0 0.0
  %786 = vmatprep.subr.mxu0 0.0
  %787 = vmatpush1.msra.mxu0 0.0
  %788 = vmatprep.subr.mxu0 0.0
  %789 = vmatpush1.msra.mxu0 0.0
  %790 = vmatprep.subr.mxu0 0.0
  %791 = vmatpush1.msra.mxu0 0.0
  %792 = vmatprep.subr.mxu0 0.0
  %793 = vmatpush1.msra.mxu0 %v763
  %794 = vmatprep.subr.mxu0 0.0
  %795 = vmatpush1.msra.mxu0 %v762
  %796 = vmatprep.subr.mxu0 0.0
  %797 = vmatpush2.msra.mxu0 0.0
  %798 = vmatprep.subr.mxu0 0.0
  %799 = vmatpush2.msra.mxu0 0.0
  %800 = vmatprep.subr.mxu0 0.0
  %801 = vmatpush2.msra.mxu0 0.0
  %802 = vmatprep.subr.mxu0 0.0
  %803 = vmatpush2.msra.mxu0 0.0
  %804 = vmatprep.subr.mxu0 0.0
  %805 = vmatpush2.msra.mxu0 0.0
  %806 = vmatprep.subr.mxu0 0.0
  %807 = vmatpush2.msra.mxu0 0.0
  %808 = vmatprep.subr.mxu0 0.0
  %809 = vmatpush2.msra.mxu0 0.0
  %810 = vmatprep.subr.mxu0 0.0
  %811 = vmatpush2.msra.mxu0 0.0
  %812 = vmatprep.subr.mxu0 0.0
  %813 = vmatpush2.msra.mxu0 0.0
  %814 = vmatprep.subr.mxu0 0.0
  %815 = vmatpush2.msra.mxu0 0.0
  %816 = vmatprep.subr.mxu0 0.0
  %817 = vmatpush2.msra.mxu0 0.0
  %818 = vmatprep.subr.mxu0 0.0
  %819 = vmatpush2.msra.mxu0 0.0
  %820 = vmatprep.subr.mxu0 0.0
  %821 = vmatpush2.msra.mxu0 0.0
  %822 = vmatprep.subr.mxu0 0.0
  %823 = vmatpush2.msra.mxu0 0.0
  %824 = vmatprep.subr.mxu0 0.0
  %825 = vmatpush2.msra.mxu0 0.0
  %826 = vmatprep.subr.mxu0 0.0
  %827 = vmatpush2.msra.mxu0 0.0
  %828 = vmatprep.mubr.f32.mxu0 0.0
  %829 = vmatmul.mubr.f32.gmra.mxu0 %v131
  %v830 = vpop.f32.mrf.mxu0
  %v831 = vadd.f32 0.0, %v830
  %v832 = vpop.f32.mrf.mxu0
  %833 = vdwg.mxu0
  %v834 = vmul.f32 %v831, 0.0625
  %v835 = vmul.f32 %v761, %v761
  %v836 = vsub.f32 %v834, %v835
  %v837 = vmax.f32 %v836, 0.0
  %v838 = vlaneseq
  %v839 = vshrl.u32 %v838, 7
  %v840 = vsub.s32 0, %v839
  %v841 = vrot.slane %v761, %v840
  %v842 = vsub.f32 %v683, %v841
  %v843 = vsub.f32 %v686, %v841
  %v844 = vadd.f32 %v837, 1e-05
  %v845 = vrsqrt.pop %v844
  %v846 = vlaneseq
  %v847 = vshrl.u32 %v846, 7
  %v848 = vsub.s32 0, %v847
  %v849 = vrot.slane %v845, %v848
  %v850 = vmul.f32 %v842, %v849
  %v851 = vmul.f32 %v843, %v849
  %v852 = vlaneseq
  %v853 = vshrl.u32 %v852, 7
  %v854 = vsub.s32 0, %v853
  %v855 = vrot.slane %v689, %v854
  %v856 = vmul.f32 %v850, %v855
  %v857 = vmul.f32 %v851, %v855
  %v858 = vlaneseq
  %v859 = vshrl.u32 %v858, 7
  %v860 = vsub.s32 0, %v859
  %v861 = vrot.slane %v690, %v860
  %v862 = vadd.f32 %v856, %v861
  %v863 = vadd.f32 %v857, %v861
  %v864 = vmax.f32 %v862, 0.0
  %v865 = vmax.f32 %v863, 0.0
  %v866 = vadd.f32 %v864, %v587
  %v867 = vadd.f32 %v865, %v588
  %v868 = vpack.c.bf16 %v867, %v866
  %v869 = vld [vmem:[%s0 + $0x18] sm:$0xf]
  %v870 = vld [vmem:[%s0 + $0x1c] sm:$0xf]
  %v873 = vunpack.c.l.b16 %v869
  %v874 = vunpack.c.l.b16 %v870
  %v875 = vpack.c.b16 %v874, %v873
  %v878 = vsel %vm30, %v868, 0
  %880 = vmatprep.subr.bf16.mxu0 0
  %881 = vmatpush1.bf16.msra.mxu0 0
  %882 = vmatprep.subr.bf16.mxu0 0
  %883 = vmatpush1.bf16.msra.mxu0 0
  %884 = vmatprep.subr.bf16.mxu0 0
  %885 = vmatpush1.bf16.msra.mxu0 0
  %886 = vmatprep.subr.bf16.mxu0 0
  %887 = vmatpush1.bf16.msra.mxu0 0
  %888 = vmatprep.subr.bf16.mxu0 0
  %889 = vmatpush1.bf16.msra.mxu0 0
  %890 = vmatprep.subr.bf16.mxu0 0
  %891 = vmatpush1.bf16.msra.mxu0 0
  %892 = vmatprep.subr.bf16.mxu0 0
  %893 = vmatpush1.bf16.msra.mxu0 0
  %894 = vmatprep.subr.bf16.mxu0 0
  %895 = vmatpush1.bf16.msra.mxu0 %v875
  %896 = vmatprep.subr.bf16.mxu0 0
  %897 = vmatpush2.bf16.msra.mxu0 0
  %898 = vmatprep.subr.bf16.mxu0 0
  %899 = vmatpush2.bf16.msra.mxu0 0
  %900 = vmatprep.subr.bf16.mxu0 0
  %901 = vmatpush2.bf16.msra.mxu0 0
  %902 = vmatprep.subr.bf16.mxu0 0
  %903 = vmatpush2.bf16.msra.mxu0 0
  %904 = vmatprep.subr.bf16.mxu0 0
  %905 = vmatpush2.bf16.msra.mxu0 0
  %906 = vmatprep.subr.bf16.mxu0 0
  %907 = vmatpush2.bf16.msra.mxu0 0
  %908 = vmatprep.subr.bf16.mxu0 0
  %909 = vmatpush2.bf16.msra.mxu0 0
  %910 = vmatprep.subr.bf16.mxu0 0
  %911 = vmatpush2.bf16.msra.mxu0 0
  %912 = vmatprep.mubr.bf16.mxu0 0
  %913 = vmatmul.mubr.bf16.gmra.mxu0 %v878
  %v914 = vpop.f32.mrf.mxu0
  %v915 = vadd.f32 0.0, %v914
  %v916 = vpop.f32.mrf.mxu0
  %v917 = vpop.f32.mrf.mxu0
  %v918 = vadd.f32 0.0, %v917
  %v919 = vpop.f32.mrf.mxu0
  %920 = vdwg.mxu0
  %923 = vrot.lane.b32.xlu0 %v915, 112
  %v924 = vpop.permute.xlu0 %923
  %925 = vrot.lane.b32.xlu0 %v918, 112
  %v926 = vpop.permute.xlu0 %925
  %929 = vxpose.xlu0.b32.start [1/16] %v924, 128
  %930 = vxpose.xlu0.b32.cont [2/16] %v926, 128
  %931 = vxpose.xlu0.b32.cont [3/16] 0.0, 128
  %932 = vxpose.xlu0.b32.cont [4/16] 0.0, 128
  %933 = vxpose.xlu0.b32.cont [5/16] 0.0, 128
  %934 = vxpose.xlu0.b32.cont [6/16] 0.0, 128
  %935 = vxpose.xlu0.b32.cont [7/16] 0.0, 128
  %936 = vxpose.xlu0.b32.cont [8/16] 0.0, 128
  %937 = vxpose.xlu0.b32.cont [9/16] 0.0, 128
  %938 = vxpose.xlu0.b32.cont [10/16] 0.0, 128
  %939 = vxpose.xlu0.b32.cont [11/16] 0.0, 128
  %940 = vxpose.xlu0.b32.cont [12/16] 0.0, 128
  %941 = vxpose.xlu0.b32.cont [13/16] 0.0, 128
  %942 = vxpose.xlu0.b32.cont [14/16] 0.0, 128
  %943 = vxpose.xlu0.b32.cont [15/16] 0.0, 128
  %944 = vxpose.xlu0.b32.end [16/16] 0.0, 128
  %v945 = vpop.trf.xlu0
  %v946 = vpop.trf.xlu0
  %v947 = vpop.trf.xlu0
  %v948 = vpop.trf.xlu0
  %v949 = vpop.trf.xlu0
  %v950 = vpop.trf.xlu0
  %v951 = vpop.trf.xlu0
  %v952 = vpop.trf.xlu0
  %v953 = vpop.trf.xlu0
  %v954 = vpop.trf.xlu0
  %v955 = vpop.trf.xlu0
  %v956 = vpop.trf.xlu0
  %v957 = vpop.trf.xlu0
  %v958 = vpop.trf.xlu0
  %v959 = vpop.trf.xlu0
  %v960 = vpop.trf.xlu0
  %961 = vset.pattern.permute.xlu0 17
  %962 = vperm.xlu0 %961, %v915
  %v963 = vpop.permute.xlu0 %962
  %965 = vset.pattern.permute.xlu0 17
  %966 = vperm.xlu0 %965, %v918
  %v967 = vpop.permute.xlu0 %966
  %v969 = vlaneseq
  %v970 = vshrl.u32 %v969, 7
  %v971 = vsub.s32 0, %v970
  %v972 = vrot.slane %v945, %v971
  %v973 = vadd.f32 %v963, %v972
  %v974 = vadd.f32 %v967, %v972
  %vm975 = vcmp.gt.f32.partialorder %v973, 0.0
  %vm976 = vcmp.gt.f32.partialorder %v974, 0.0
  %v977 = vmul.f32 %v973, 0.2
  %v978 = vmul.f32 %v974, 0.2
  %v979 = vsel %vm975, %v973, %v977
  %v980 = vsel %vm976, %v974, %v978
  %vm981 = vcmp.gt.f32.partialorder %v18, 0.0
  %vm982 = vcmp.gt.f32.partialorder %v19, 0.0
  %985 = vrot.lane.b32.xlu0 %v979, 32
  %v986 = vpop.permute.xlu0 %985
  %987 = vrot.lane.b32.xlu0 %v980, 32
  %v988 = vpop.permute.xlu0 %987
  %v991 = vsel %vm981, %v986, -1e+30
  %v992 = vsel %vm982, %v988, -1e+30
  %vm993 = vcmask 392448
  %v994 = vsel %vm993, %v991, -inf
  %995 = vmax.xlane.f32.xlu0 %v994
  %v996 = vpop.xlane.xlu0 %995
  %v997 = vsel %vm993, %v992, -inf
  %998 = vmax.xlane.f32.xlu0 %v997
  %v999 = vpop.xlane.xlu0 %998
  %v1000 = vsub.f32 %v991, %v996
  %v1001 = vsub.f32 %v992, %v999
  %v1002 = vmul.f32 %v1000, 1.442695
  %v1003 = vpow.pop %v1002
  %v1004 = vmul.f32 %v1001, 1.442695
  %v1005 = vpow.pop %v1004
  %1008 = vrot.lane.b32.xlu0 %v1003, 96
  %v1009 = vpop.permute.xlu0 %1008
  %1010 = vrot.lane.b32.xlu0 %v1005, 96
  %v1011 = vpop.permute.xlu0 %1010
  %v1014 = vsel %vm30, %v1009, 0.0
  %1015 = vadd.xlane.f32.xlu0 %v1014
  %v1016 = vpop.xlane.xlu0 %1015
  %v1017 = vsel %vm30, %v1011, 0.0
  %1018 = vadd.xlane.f32.xlu0 %v1017
  %v1019 = vpop.xlane.xlu0 %1018
  %v1020 = vrcp.pop %v1016
  %v1021 = vrcp.pop %v1019
  %v1022 = vmul.f32 %v1003, %v1020
  %v1023 = vmul.f32 %v1005, %v1021
  %v1024 = vpack.c.bf16 %v1023, %v1022
  %v1025 = vpack.c.bf16 %v918, %v915
  %v1026 = vld [vmem:[%s1 + $0x9] sm:$0x1]
  %v1027 = vlaneseq
  %v1028 = vshrl.u32 %v1027, 7
  %v1029 = vsub.s32 0, %v1028
  %v1030 = vrot.slane %v1026, %v1029
  %1032 = vrot.lane.b32.xlu0 %v1024, 96
  %v1033 = vpop.permute.xlu0 %1032
  %v1035 = vsel %vm30, %v1033, 0
  %1037 = vmatprep.subr.bf16.mxu0 0
  %1038 = vmatpush1.bf16.msra.mxu0 0
  %1039 = vmatprep.subr.bf16.mxu0 0
  %1040 = vmatpush1.bf16.msra.mxu0 0
  %1041 = vmatprep.subr.bf16.mxu0 0
  %1042 = vmatpush1.bf16.msra.mxu0 0
  %1043 = vmatprep.subr.bf16.mxu0 0
  %1044 = vmatpush1.bf16.msra.mxu0 0
  %1045 = vmatprep.subr.bf16.mxu0 0
  %1046 = vmatpush1.bf16.msra.mxu0 0
  %1047 = vmatprep.subr.bf16.mxu0 0
  %1048 = vmatpush1.bf16.msra.mxu0 0
  %1049 = vmatprep.subr.bf16.mxu0 0
  %1050 = vmatpush1.bf16.msra.mxu0 0
  %1051 = vmatprep.subr.bf16.mxu0 0
  %1052 = vmatpush1.bf16.msra.mxu0 %v1025
  %1053 = vmatprep.subr.bf16.mxu0 0
  %1054 = vmatpush2.bf16.msra.mxu0 0
  %1055 = vmatprep.subr.bf16.mxu0 0
  %1056 = vmatpush2.bf16.msra.mxu0 0
  %1057 = vmatprep.subr.bf16.mxu0 0
  %1058 = vmatpush2.bf16.msra.mxu0 0
  %1059 = vmatprep.subr.bf16.mxu0 0
  %1060 = vmatpush2.bf16.msra.mxu0 0
  %1061 = vmatprep.subr.bf16.mxu0 0
  %1062 = vmatpush2.bf16.msra.mxu0 0
  %1063 = vmatprep.subr.bf16.mxu0 0
  %1064 = vmatpush2.bf16.msra.mxu0 0
  %1065 = vmatprep.subr.bf16.mxu0 0
  %1066 = vmatpush2.bf16.msra.mxu0 0
  %1067 = vmatprep.subr.bf16.mxu0 0
  %1068 = vmatpush2.bf16.msra.mxu0 0
  %1069 = vmatprep.mubr.bf16.mxu0 0
  %1070 = vmatmul.mubr.bf16.gmra.mxu0 %v1035
  %v1071 = vpop.f32.mrf.mxu0
  %v1072 = vadd.f32 %v1030, %v1071
  %v1073 = vpop.f32.mrf.mxu0
  %v1074 = vpop.f32.mrf.mxu0
  %v1075 = vadd.f32 %v1030, %v1074
  %v1076 = vpop.f32.mrf.mxu0
  %1077 = vdwg.mxu0
  %v1078 = vld [vmem:[%s1 + $0xa] sm:$0x1]
  %v1079 = vld [vmem:[%s1 + $0xb] sm:$0x1]
  %1080 = vmatprep.subr.mxu0 0.0
  %1081 = vmatpush1.msra.mxu0 0.0
  %1082 = vmatprep.subr.mxu0 0.0
  %1083 = vmatpush1.msra.mxu0 0.0
  %1084 = vmatprep.subr.mxu0 0.0
  %1085 = vmatpush1.msra.mxu0 0.0
  %1086 = vmatprep.subr.mxu0 0.0
  %1087 = vmatpush1.msra.mxu0 0.0
  %1088 = vmatprep.subr.mxu0 0.0
  %1089 = vmatpush1.msra.mxu0 0.0
  %1090 = vmatprep.subr.mxu0 0.0
  %1091 = vmatpush1.msra.mxu0 0.0
  %1092 = vmatprep.subr.mxu0 0.0
  %1093 = vmatpush1.msra.mxu0 0.0
  %1094 = vmatprep.subr.mxu0 0.0
  %1095 = vmatpush1.msra.mxu0 0.0
  %1096 = vmatprep.subr.mxu0 0.0
  %1097 = vmatpush1.msra.mxu0 0.0
  %1098 = vmatprep.subr.mxu0 0.0
  %1099 = vmatpush1.msra.mxu0 0.0
  %1100 = vmatprep.subr.mxu0 0.0
  %1101 = vmatpush1.msra.mxu0 0.0
  %1102 = vmatprep.subr.mxu0 0.0
  %1103 = vmatpush1.msra.mxu0 0.0
  %1104 = vmatprep.subr.mxu0 0.0
  %1105 = vmatpush1.msra.mxu0 0.0
  %1106 = vmatprep.subr.mxu0 0.0
  %1107 = vmatpush1.msra.mxu0 0.0
  %1108 = vmatprep.subr.mxu0 0.0
  %1109 = vmatpush1.msra.mxu0 %v1075
  %1110 = vmatprep.subr.mxu0 0.0
  %1111 = vmatpush1.msra.mxu0 %v1072
  %1112 = vmatprep.subr.mxu0 0.0
  %1113 = vmatpush2.msra.mxu0 0.0
  %1114 = vmatprep.subr.mxu0 0.0
  %1115 = vmatpush2.msra.mxu0 0.0
  %1116 = vmatprep.subr.mxu0 0.0
  %1117 = vmatpush2.msra.mxu0 0.0
  %1118 = vmatprep.subr.mxu0 0.0
  %1119 = vmatpush2.msra.mxu0 0.0
  %1120 = vmatprep.subr.mxu0 0.0
  %1121 = vmatpush2.msra.mxu0 0.0
  %1122 = vmatprep.subr.mxu0 0.0
  %1123 = vmatpush2.msra.mxu0 0.0
  %1124 = vmatprep.subr.mxu0 0.0
  %1125 = vmatpush2.msra.mxu0 0.0
  %1126 = vmatprep.subr.mxu0 0.0
  %1127 = vmatpush2.msra.mxu0 0.0
  %1128 = vmatprep.subr.mxu0 0.0
  %1129 = vmatpush2.msra.mxu0 0.0
  %1130 = vmatprep.subr.mxu0 0.0
  %1131 = vmatpush2.msra.mxu0 0.0
  %1132 = vmatprep.subr.mxu0 0.0
  %1133 = vmatpush2.msra.mxu0 0.0
  %1134 = vmatprep.subr.mxu0 0.0
  %1135 = vmatpush2.msra.mxu0 0.0
  %1136 = vmatprep.subr.mxu0 0.0
  %1137 = vmatpush2.msra.mxu0 0.0
  %1138 = vmatprep.subr.mxu0 0.0
  %1139 = vmatpush2.msra.mxu0 0.0
  %1140 = vmatprep.subr.mxu0 0.0
  %1141 = vmatpush2.msra.mxu0 0.0
  %1142 = vmatprep.subr.mxu0 0.0
  %1143 = vmatpush2.msra.mxu0 0.0
  %1144 = vmatprep.mubr.f32.mxu0 0.0
  %1145 = vmatmul.mubr.f32.gmra.mxu0 %v131
  %v1146 = vpop.f32.mrf.mxu0
  %v1147 = vadd.f32 0.0, %v1146
  %v1148 = vpop.f32.mrf.mxu0
  %1149 = vdwg.mxu0
  %v1150 = vmul.f32 %v1147, 0.0625
  %v1151 = vmul.f32 %v1072, %v1072
  %v1152 = vmul.f32 %v1075, %v1075
  %1153 = vmatprep.subr.mxu0 0.0
  %1154 = vmatpush1.msra.mxu0 0.0
  %1155 = vmatprep.subr.mxu0 0.0
  %1156 = vmatpush1.msra.mxu0 0.0
  %1157 = vmatprep.subr.mxu0 0.0
  %1158 = vmatpush1.msra.mxu0 0.0
  %1159 = vmatprep.subr.mxu0 0.0
  %1160 = vmatpush1.msra.mxu0 0.0
  %1161 = vmatprep.subr.mxu0 0.0
  %1162 = vmatpush1.msra.mxu0 0.0
  %1163 = vmatprep.subr.mxu0 0.0
  %1164 = vmatpush1.msra.mxu0 0.0
  %1165 = vmatprep.subr.mxu0 0.0
  %1166 = vmatpush1.msra.mxu0 0.0
  %1167 = vmatprep.subr.mxu0 0.0
  %1168 = vmatpush1.msra.mxu0 0.0
  %1169 = vmatprep.subr.mxu0 0.0
  %1170 = vmatpush1.msra.mxu0 0.0
  %1171 = vmatprep.subr.mxu0 0.0
  %1172 = vmatpush1.msra.mxu0 0.0
  %1173 = vmatprep.subr.mxu0 0.0
  %1174 = vmatpush1.msra.mxu0 0.0
  %1175 = vmatprep.subr.mxu0 0.0
  %1176 = vmatpush1.msra.mxu0 0.0
  %1177 = vmatprep.subr.mxu0 0.0
  %1178 = vmatpush1.msra.mxu0 0.0
  %1179 = vmatprep.subr.mxu0 0.0
  %1180 = vmatpush1.msra.mxu0 0.0
  %1181 = vmatprep.subr.mxu0 0.0
  %1182 = vmatpush1.msra.mxu0 %v1152
  %1183 = vmatprep.subr.mxu0 0.0
  %1184 = vmatpush1.msra.mxu0 %v1151
  %1185 = vmatprep.subr.mxu0 0.0
  %1186 = vmatpush2.msra.mxu0 0.0
  %1187 = vmatprep.subr.mxu0 0.0
  %1188 = vmatpush2.msra.mxu0 0.0
  %1189 = vmatprep.subr.mxu0 0.0
  %1190 = vmatpush2.msra.mxu0 0.0
  %1191 = vmatprep.subr.mxu0 0.0
  %1192 = vmatpush2.msra.mxu0 0.0
  %1193 = vmatprep.subr.mxu0 0.0
  %1194 = vmatpush2.msra.mxu0 0.0
  %1195 = vmatprep.subr.mxu0 0.0
  %1196 = vmatpush2.msra.mxu0 0.0
  %1197 = vmatprep.subr.mxu0 0.0
  %1198 = vmatpush2.msra.mxu0 0.0
  %1199 = vmatprep.subr.mxu0 0.0
  %1200 = vmatpush2.msra.mxu0 0.0
  %1201 = vmatprep.subr.mxu0 0.0
  %1202 = vmatpush2.msra.mxu0 0.0
  %1203 = vmatprep.subr.mxu0 0.0
  %1204 = vmatpush2.msra.mxu0 0.0
  %1205 = vmatprep.subr.mxu0 0.0
  %1206 = vmatpush2.msra.mxu0 0.0
  %1207 = vmatprep.subr.mxu0 0.0
  %1208 = vmatpush2.msra.mxu0 0.0
  %1209 = vmatprep.subr.mxu0 0.0
  %1210 = vmatpush2.msra.mxu0 0.0
  %1211 = vmatprep.subr.mxu0 0.0
  %1212 = vmatpush2.msra.mxu0 0.0
  %1213 = vmatprep.subr.mxu0 0.0
  %1214 = vmatpush2.msra.mxu0 0.0
  %1215 = vmatprep.subr.mxu0 0.0
  %1216 = vmatpush2.msra.mxu0 0.0
  %1217 = vmatprep.mubr.f32.mxu0 0.0
  %1218 = vmatmul.mubr.f32.gmra.mxu0 %v131
  %v1219 = vpop.f32.mrf.mxu0
  %v1220 = vadd.f32 0.0, %v1219
  %v1221 = vpop.f32.mrf.mxu0
  %1222 = vdwg.mxu0
  %v1223 = vmul.f32 %v1220, 0.0625
  %v1224 = vmul.f32 %v1150, %v1150
  %v1225 = vsub.f32 %v1223, %v1224
  %v1226 = vmax.f32 %v1225, 0.0
  %v1227 = vlaneseq
  %v1228 = vshrl.u32 %v1227, 7
  %v1229 = vsub.s32 0, %v1228
  %v1230 = vrot.slane %v1150, %v1229
  %v1231 = vsub.f32 %v1072, %v1230
  %v1232 = vsub.f32 %v1075, %v1230
  %v1233 = vadd.f32 %v1226, 1e-05
  %v1234 = vrsqrt.pop %v1233
  %v1235 = vlaneseq
  %v1236 = vshrl.u32 %v1235, 7
  %v1237 = vsub.s32 0, %v1236
  %v1238 = vrot.slane %v1234, %v1237
  %v1239 = vmul.f32 %v1231, %v1238
  %v1240 = vmul.f32 %v1232, %v1238
  %v1241 = vlaneseq
  %v1242 = vshrl.u32 %v1241, 7
  %v1243 = vsub.s32 0, %v1242
  %v1244 = vrot.slane %v1078, %v1243
  %v1245 = vmul.f32 %v1239, %v1244
  %v1246 = vmul.f32 %v1240, %v1244
  %v1247 = vlaneseq
  %v1248 = vshrl.u32 %v1247, 7
  %v1249 = vsub.s32 0, %v1248
  %v1250 = vrot.slane %v1079, %v1249
  %v1251 = vadd.f32 %v1245, %v1250
  %v1252 = vadd.f32 %v1246, %v1250
  %v1253 = vmax.f32 %v1251, 0.0
  %v1254 = vmax.f32 %v1252, 0.0
  %v1255 = vadd.f32 %v1253, %v866
  %v1256 = vadd.f32 %v1254, %v867
  %v1258 = vsel %vm30, %v21, 0
  %1260 = vmatprep.subr.mxu0 0.0
  %1261 = vmatpush1.msra.mxu0 0.0
  %1262 = vmatprep.subr.mxu0 0.0
  %1263 = vmatpush1.msra.mxu0 0.0
  %1264 = vmatprep.subr.mxu0 0.0
  %1265 = vmatpush1.msra.mxu0 0.0
  %1266 = vmatprep.subr.mxu0 0.0
  %1267 = vmatpush1.msra.mxu0 0.0
  %1268 = vmatprep.subr.mxu0 0.0
  %1269 = vmatpush1.msra.mxu0 0.0
  %1270 = vmatprep.subr.mxu0 0.0
  %1271 = vmatpush1.msra.mxu0 0.0
  %1272 = vmatprep.subr.mxu0 0.0
  %1273 = vmatpush1.msra.mxu0 0.0
  %1274 = vmatprep.subr.mxu0 0.0
  %1275 = vmatpush1.msra.mxu0 0.0
  %1276 = vmatprep.subr.mxu0 0.0
  %1277 = vmatpush1.msra.mxu0 0.0
  %1278 = vmatprep.subr.mxu0 0.0
  %1279 = vmatpush1.msra.mxu0 0.0
  %1280 = vmatprep.subr.mxu0 0.0
  %1281 = vmatpush1.msra.mxu0 0.0
  %1282 = vmatprep.subr.mxu0 0.0
  %1283 = vmatpush1.msra.mxu0 0.0
  %1284 = vmatprep.subr.mxu0 0.0
  %1285 = vmatpush1.msra.mxu0 0.0
  %1286 = vmatprep.subr.mxu0 0.0
  %1287 = vmatpush1.msra.mxu0 0.0
  %1288 = vmatprep.subr.mxu0 0.0
  %1289 = vmatpush1.msra.mxu0 %v1256
  %1290 = vmatprep.subr.mxu0 0.0
  %1291 = vmatpush1.msra.mxu0 %v1255
  %1292 = vmatprep.subr.mxu0 0.0
  %1293 = vmatpush2.msra.mxu0 0.0
  %1294 = vmatprep.subr.mxu0 0.0
  %1295 = vmatpush2.msra.mxu0 0.0
  %1296 = vmatprep.subr.mxu0 0.0
  %1297 = vmatpush2.msra.mxu0 0.0
  %1298 = vmatprep.subr.mxu0 0.0
  %1299 = vmatpush2.msra.mxu0 0.0
  %1300 = vmatprep.subr.mxu0 0.0
  %1301 = vmatpush2.msra.mxu0 0.0
  %1302 = vmatprep.subr.mxu0 0.0
  %1303 = vmatpush2.msra.mxu0 0.0
  %1304 = vmatprep.subr.mxu0 0.0
  %1305 = vmatpush2.msra.mxu0 0.0
  %1306 = vmatprep.subr.mxu0 0.0
  %1307 = vmatpush2.msra.mxu0 0.0
  %1308 = vmatprep.subr.mxu0 0.0
  %1309 = vmatpush2.msra.mxu0 0.0
  %1310 = vmatprep.subr.mxu0 0.0
  %1311 = vmatpush2.msra.mxu0 0.0
  %1312 = vmatprep.subr.mxu0 0.0
  %1313 = vmatpush2.msra.mxu0 0.0
  %1314 = vmatprep.subr.mxu0 0.0
  %1315 = vmatpush2.msra.mxu0 0.0
  %1316 = vmatprep.subr.mxu0 0.0
  %1317 = vmatpush2.msra.mxu0 0.0
  %1318 = vmatprep.subr.mxu0 0.0
  %1319 = vmatpush2.msra.mxu0 0.0
  %1320 = vmatprep.subr.mxu0 0.0
  %1321 = vmatpush2.msra.mxu0 0.0
  %1322 = vmatprep.subr.mxu0 0.0
  %1323 = vmatpush2.msra.mxu0 0.0
  %1324 = vmatprep.mubr.f32.mxu0 0.0
  %1325 = vmatmul.mubr.f32.gmra.mxu0 %v1258
  %v1326 = vpop.f32.mrf.mxu0
  %v1327 = vadd.f32 0.0, %v1326
  %v1328 = vpop.f32.mrf.mxu0
  %1329 = vdwg.mxu0
  %v1330 = vpack.c.bf16 %v1327, %v1327
  %v1331 = vld [vmem:[%s0 + $0x20] sm:$0xf]
  %v1332 = vld [vmem:[%s0 + $0x24] sm:$0xf]
  %v1333 = vld [vmem:[%s1 + $0xc] sm:$0x1]
  %v1334 = vlaneseq
  %v1335 = vshrl.u32 %v1334, 7
  %v1336 = vsub.s32 0, %v1335
  %v1337 = vrot.slane %v1333, %v1336
  %v1340 = vunpack.c.l.b16 %v1331
  %v1341 = vunpack.c.l.b16 %v1332
  %v1342 = vpack.c.b16 %v1341, %v1340
  %v1345 = vsel %vm30, %v1330, 0
  %1347 = vmatprep.subr.bf16.mxu0 0
  %1348 = vmatpush1.bf16.msra.mxu0 0
  %1349 = vmatprep.subr.bf16.mxu0 0
  %1350 = vmatpush1.bf16.msra.mxu0 0
  %1351 = vmatprep.subr.bf16.mxu0 0
  %1352 = vmatpush1.bf16.msra.mxu0 0
  %1353 = vmatprep.subr.bf16.mxu0 0
  %1354 = vmatpush1.bf16.msra.mxu0 0
  %1355 = vmatprep.subr.bf16.mxu0 0
  %1356 = vmatpush1.bf16.msra.mxu0 0
  %1357 = vmatprep.subr.bf16.mxu0 0
  %1358 = vmatpush1.bf16.msra.mxu0 0
  %1359 = vmatprep.subr.bf16.mxu0 0
  %1360 = vmatpush1.bf16.msra.mxu0 0
  %1361 = vmatprep.subr.bf16.mxu0 0
  %1362 = vmatpush1.bf16.msra.mxu0 %v1342
  %1363 = vmatprep.subr.bf16.mxu0 0
  %1364 = vmatpush2.bf16.msra.mxu0 0
  %1365 = vmatprep.subr.bf16.mxu0 0
  %1366 = vmatpush2.bf16.msra.mxu0 0
  %1367 = vmatprep.subr.bf16.mxu0 0
  %1368 = vmatpush2.bf16.msra.mxu0 0
  %1369 = vmatprep.subr.bf16.mxu0 0
  %1370 = vmatpush2.bf16.msra.mxu0 0
  %1371 = vmatprep.subr.bf16.mxu0 0
  %1372 = vmatpush2.bf16.msra.mxu0 0
  %1373 = vmatprep.subr.bf16.mxu0 0
  %1374 = vmatpush2.bf16.msra.mxu0 0
  %1375 = vmatprep.subr.bf16.mxu0 0
  %1376 = vmatpush2.bf16.msra.mxu0 0
  %1377 = vmatprep.subr.bf16.mxu0 0
  %1378 = vmatpush2.bf16.msra.mxu0 0
  %1379 = vmatprep.mubr.bf16.mxu0 0
  %1380 = vmatmul.mubr.bf16.gmra.mxu0 %v1345
  %v1381 = vpop.f32.mrf.mxu0
  %v1382 = vadd.f32 %v1337, %v1381
  %v1383 = vpop.f32.mrf.mxu0
  %v1384 = vpop.f32.mrf.mxu0
  %v1385 = vpop.f32.mrf.mxu0
  %1386 = vdwg.mxu0
  %v1387 = vmax.f32 %v1382, 0.0
  %v1388 = vpack.c.bf16 %v1387, %v1387
  %v1389 = vld [vmem:[%s0 + $0x28] sm:$0xf]
  %v1390 = vld [vmem:[%s0 + $0x2c] sm:$0xf]
  %v1391 = vld [vmem:[%s0 + $0x30] sm:$0xf]
  %v1392 = vld [vmem:[%s0 + $0x34] sm:$0xf]
  %v1393 = vld [vmem:[%s1 + $0xd] sm:$0x1]
  %v1394 = vlaneseq
  %v1395 = vshrl.u32 %v1394, 7
  %v1396 = vsub.s32 0, %v1395
  %v1397 = vrot.slane %v1393, %v1396
  %v1402 = vunpack.c.l.b16 %v1389
  %v1403 = vunpack.c.l.b16 %v1390
  %v1404 = vunpack.c.l.b16 %v1391
  %v1405 = vunpack.c.l.b16 %v1392
  %v1406 = vpack.c.b16 %v1403, %v1402
  %v1407 = vpack.c.b16 %v1405, %v1404
  %vm1410 = vcmask 261120
  %v1412 = vsel %vm1410, %v1388, 0
  %1414 = vmatprep.subr.bf16.mxu0 0
  %1415 = vmatpush1.bf16.msra.mxu0 0
  %1416 = vmatprep.subr.bf16.mxu0 0
  %1417 = vmatpush1.bf16.msra.mxu0 0
  %1418 = vmatprep.subr.bf16.mxu0 0
  %1419 = vmatpush1.bf16.msra.mxu0 0
  %1420 = vmatprep.subr.bf16.mxu0 0
  %1421 = vmatpush1.bf16.msra.mxu0 0
  %1422 = vmatprep.subr.bf16.mxu0 0
  %1423 = vmatpush1.bf16.msra.mxu0 0
  %1424 = vmatprep.subr.bf16.mxu0 0
  %1425 = vmatpush1.bf16.msra.mxu0 0
  %1426 = vmatprep.subr.bf16.mxu0 0
  %1427 = vmatpush1.bf16.msra.mxu0 %v1407
  %1428 = vmatprep.subr.bf16.mxu0 0
  %1429 = vmatpush1.bf16.msra.mxu0 %v1406
  %1430 = vmatprep.subr.bf16.mxu0 0
  %1431 = vmatpush2.bf16.msra.mxu0 0
  %1432 = vmatprep.subr.bf16.mxu0 0
  %1433 = vmatpush2.bf16.msra.mxu0 0
  %1434 = vmatprep.subr.bf16.mxu0 0
  %1435 = vmatpush2.bf16.msra.mxu0 0
  %1436 = vmatprep.subr.bf16.mxu0 0
  %1437 = vmatpush2.bf16.msra.mxu0 0
  %1438 = vmatprep.subr.bf16.mxu0 0
  %1439 = vmatpush2.bf16.msra.mxu0 0
  %1440 = vmatprep.subr.bf16.mxu0 0
  %1441 = vmatpush2.bf16.msra.mxu0 0
  %1442 = vmatprep.subr.bf16.mxu0 0
  %1443 = vmatpush2.bf16.msra.mxu0 0
  %1444 = vmatprep.subr.bf16.mxu0 0
  %1445 = vmatpush2.bf16.msra.mxu0 0
  %1446 = vmatprep.mubr.bf16.mxu0 0
  %1447 = vmatmul.mubr.bf16.gmra.mxu0 %v1412
  %v1448 = vpop.f32.mrf.mxu0
  %v1449 = vadd.f32 %v1397, %v1448
  %v1450 = vpop.f32.mrf.mxu0
  %v1451 = vpop.f32.mrf.mxu0
  %v1452 = vpop.f32.mrf.mxu0
  %1453 = vdwg.mxu0
  %1454 = vst [vmem:[%s3] sm:$0x3] %v1449
  %v1455 = vld [vmem:[%s2 + $0x18] sm:$0xff]
  %v1456 = vld [vmem:[%s2 + $0x20] sm:$0xff]
  %v1457 = vld [vmem:[%s1 + $0xe] sm:$0x1]
  %v1458 = vld [vmem:[%s1 + $0xf] sm:$0x1]
  %v1459 = vsel %vm1410, %v1455, 0.0
  %1460 = vadd.xlane.f32.xlu0 %v1459
  %v1461 = vpop.xlane.xlu0 %1460
  %v1462 = vsel %vm1410, %v1456, 0.0
  %1463 = vadd.xlane.f32.xlu0 %v1462
  %v1464 = vpop.xlane.xlu0 %1463
  %v1465 = vrcp.pop 32.0
  %v1466 = vmul.f32 %v1461, %v1465
  %v1467 = vmul.f32 %v1464, %v1465
  %v1468 = vsub.f32 %v1455, %v1466
  %v1469 = vsub.f32 %v1456, %v1467
  %v1470 = vmul.f32 %v1468, %v1468
  %v1471 = vmul.f32 %v1469, %v1469
  %v1472 = vsel %vm1410, %v1470, 0.0
  %1473 = vadd.xlane.f32.xlu0 %v1472
  %v1474 = vpop.xlane.xlu0 %1473
  %v1475 = vsel %vm1410, %v1471, 0.0
  %1476 = vadd.xlane.f32.xlu0 %v1475
  %v1477 = vpop.xlane.xlu0 %1476
  %v1478 = vmul.f32 %v1474, %v1465
  %v1479 = vmul.f32 %v1477, %v1465
  %v1480 = vadd.f32 %v1478, 1e-12
  %v1481 = vadd.f32 %v1479, 1e-12
  %v1482 = vrsqrt.pop %v1480
  %v1483 = vrsqrt.pop %v1481
  %v1484 = vmul.f32 %v1468, %v1482
  %v1485 = vmul.f32 %v1469, %v1483
  %v1486 = vlaneseq
  %v1487 = vshrl.u32 %v1486, 7
  %v1488 = vsub.s32 0, %v1487
  %v1489 = vrot.slane %v1457, %v1488
  %v1490 = vmul.f32 %v1484, %v1489
  %v1491 = vmul.f32 %v1485, %v1489
  %v1492 = vlaneseq
  %v1493 = vshrl.u32 %v1492, 7
  %v1494 = vsub.s32 0, %v1493
  %v1495 = vrot.slane %v1458, %v1494
  %v1496 = vadd.f32 %v1490, %v1495
  %v1497 = vadd.f32 %v1491, %v1495
  %v1498 = vpack.c.bf16 %v1497, %v1496
  %v1499 = vld [vmem:[%s0 + $0x38] sm:$0xf]
  %v1500 = vld [vmem:[%s0 + $0x3c] sm:$0xf]
  %v1501 = vld [vmem:[%s0 + $0x40] sm:$0xf]
  %v1502 = vld [vmem:[%s0 + $0x44] sm:$0xf]
  %v1503 = vld [vmem:[%s1 + $0x10] sm:$0x1]
  %v1504 = vlaneseq
  %v1505 = vshrl.u32 %v1504, 7
  %v1506 = vsub.s32 0, %v1505
  %v1507 = vrot.slane %v1503, %v1506
  %v1512 = vunpack.c.l.b16 %v1499
  %v1513 = vunpack.c.l.b16 %v1500
  %v1514 = vunpack.c.l.b16 %v1501
  %v1515 = vunpack.c.l.b16 %v1502
  %v1516 = vpack.c.b16 %v1513, %v1512
  %v1517 = vpack.c.b16 %v1515, %v1514
  %v1521 = vsel %vm1410, %v1498, 0
  %1523 = vmatprep.subr.bf16.mxu0 0
  %1524 = vmatpush1.bf16.msra.mxu0 0
  %1525 = vmatprep.subr.bf16.mxu0 0
  %1526 = vmatpush1.bf16.msra.mxu0 0
  %1527 = vmatprep.subr.bf16.mxu0 0
  %1528 = vmatpush1.bf16.msra.mxu0 0
  %1529 = vmatprep.subr.bf16.mxu0 0
  %1530 = vmatpush1.bf16.msra.mxu0 0
  %1531 = vmatprep.subr.bf16.mxu0 0
  %1532 = vmatpush1.bf16.msra.mxu0 0
  %1533 = vmatprep.subr.bf16.mxu0 0
  %1534 = vmatpush1.bf16.msra.mxu0 0
  %1535 = vmatprep.subr.bf16.mxu0 0
  %1536 = vmatpush1.bf16.msra.mxu0 %v1517
  %1537 = vmatprep.subr.bf16.mxu0 0
  %1538 = vmatpush1.bf16.msra.mxu0 %v1516
  %1539 = vmatprep.subr.bf16.mxu0 0
  %1540 = vmatpush2.bf16.msra.mxu0 0
  %1541 = vmatprep.subr.bf16.mxu0 0
  %1542 = vmatpush2.bf16.msra.mxu0 0
  %1543 = vmatprep.subr.bf16.mxu0 0
  %1544 = vmatpush2.bf16.msra.mxu0 0
  %1545 = vmatprep.subr.bf16.mxu0 0
  %1546 = vmatpush2.bf16.msra.mxu0 0
  %1547 = vmatprep.subr.bf16.mxu0 0
  %1548 = vmatpush2.bf16.msra.mxu0 0
  %1549 = vmatprep.subr.bf16.mxu0 0
  %1550 = vmatpush2.bf16.msra.mxu0 0
  %1551 = vmatprep.subr.bf16.mxu0 0
  %1552 = vmatpush2.bf16.msra.mxu0 0
  %1553 = vmatprep.subr.bf16.mxu0 0
  %1554 = vmatpush2.bf16.msra.mxu0 0
  %1555 = vmatprep.mubr.bf16.mxu0 0
  %1556 = vmatmul.mubr.bf16.gmra.mxu0 %v1521
  %v1557 = vpop.f32.mrf.mxu0
  %v1558 = vadd.f32 %v1507, %v1557
  %v1559 = vpop.f32.mrf.mxu0
  %v1560 = vpop.f32.mrf.mxu0
  %v1561 = vadd.f32 %v1507, %v1560
  %v1562 = vpop.f32.mrf.mxu0
  %1563 = vdwg.mxu0
  %v1564 = vpack.c.bf16 %v1561, %v1558
  %1566 = vrot.lane.b32.xlu0 %v1564, 96
  %v1567 = vpop.permute.xlu0 %1566
  %v1569 = vsel %vm1410, %v1564, 0
  %v1572 = vsel %vm1410, %v1567, 0
  %1574 = vmatprep.subr.bf16.mxu0 0
  %1575 = vmatpush1.bf16.xpose.msra.mxu0 0
  %1576 = vmatprep.subr.bf16.mxu0 0
  %1577 = vmatpush1.bf16.xpose.msra.mxu0 0
  %1578 = vmatprep.subr.bf16.mxu0 0
  %1579 = vmatpush1.bf16.xpose.msra.mxu0 0
  %1580 = vmatprep.subr.bf16.mxu0 0
  %1581 = vmatpush1.bf16.xpose.msra.mxu0 0
  %1582 = vmatprep.subr.bf16.mxu0 0
  %1583 = vmatpush1.bf16.xpose.msra.mxu0 0
  %1584 = vmatprep.subr.bf16.mxu0 0
  %1585 = vmatpush1.bf16.xpose.msra.mxu0 0
  %1586 = vmatprep.subr.bf16.mxu0 0
  %1587 = vmatpush1.bf16.xpose.msra.mxu0 0
  %1588 = vmatprep.subr.bf16.mxu0 0
  %1589 = vmatpush1.bf16.xpose.msra.mxu0 %v1572
  %1590 = vmatprep.subr.bf16.mxu0 0
  %1591 = vmatpush2.bf16.xpose.msra.mxu0 0
  %1592 = vmatprep.subr.bf16.mxu0 0
  %1593 = vmatpush2.bf16.xpose.msra.mxu0 0
  %1594 = vmatprep.subr.bf16.mxu0 0
  %1595 = vmatpush2.bf16.xpose.msra.mxu0 0
  %1596 = vmatprep.subr.bf16.mxu0 0
  %1597 = vmatpush2.bf16.xpose.msra.mxu0 0
  %1598 = vmatprep.subr.bf16.mxu0 0
  %1599 = vmatpush2.bf16.xpose.msra.mxu0 0
  %1600 = vmatprep.subr.bf16.mxu0 0
  %1601 = vmatpush2.bf16.xpose.msra.mxu0 0
  %1602 = vmatprep.subr.bf16.mxu0 0
  %1603 = vmatpush2.bf16.xpose.msra.mxu0 0
  %1604 = vmatprep.subr.bf16.mxu0 0
  %1605 = vmatpush2.bf16.xpose.msra.mxu0 0
  %1606 = vmatprep.mubr.bf16.mxu0 0
  %1607 = vmatmul.mubr.bf16.gmra.mxu0 %v1569
  %v1608 = vpop.f32.mrf.mxu0
  %v1609 = vadd.f32 0.0, %v1608
  %v1610 = vpop.f32.mrf.mxu0
  %v1611 = vpop.f32.mrf.mxu0
  %v1612 = vadd.f32 0.0, %v1611
  %v1613 = vpop.f32.mrf.mxu0
  %1614 = vdwg.mxu0
  %v1615 = vld [vmem:[%s2 + $0x18] sm:$0xff]
  %v1616 = vld [vmem:[%s2 + $0x20] sm:$0xff]
  %v1617 = vld [vmem:[%s2 + $0x12] sm:$0x1]
  %1619 = vset.pattern.permute.xlu0 32
  %1620 = vperm.xlu0 %1619, %v1615
  %v1621 = vpop.permute.xlu0 %1620
  %1624 = vset.pattern.permute.xlu0 32
  %1625 = vperm.xlu0 %1624, %v1616
  %v1626 = vpop.permute.xlu0 %1625
  %v1628 = vlaneseq
  %v1629 = vshrl.u32 %v1628, 7
  %v1630 = vsub.s32 0, %v1629
  %v1631 = vrot.slane %v1617, %v1630
  %vm1632 = vcmp.eq.f32.partialorder %v1621, %v1631
  %vm1633 = vcmp.eq.f32.partialorder %v1626, %v1631
  %v1634 = vsel %vm1632, %v1609, -1e+30
  %v1635 = vsel %vm1633, %v1612, -1e+30
  %v1636 = vsel %vm30, %v1634, -inf
  %1637 = vmax.xlane.f32.xlu0 %v1636
  %v1638 = vpop.xlane.xlu0 %1637
  %v1639 = vsel %vm30, %v1635, -inf
  %1640 = vmax.xlane.f32.xlu0 %v1639
  %v1641 = vpop.xlane.xlu0 %1640
  %v1642 = vsub.f32 %v1634, %v1638
  %v1643 = vsub.f32 %v1635, %v1641
  %v1644 = vmul.f32 %v1642, 1.442695
  %v1645 = vpow.pop %v1644
  %v1646 = vmul.f32 %v1643, 1.442695
  %v1647 = vpow.pop %v1646
  %v1648 = vsel %vm30, %v1645, 0.0
  %1649 = vadd.xlane.f32.xlu0 %v1648
  %v1650 = vpop.xlane.xlu0 %1649
  %v1651 = vsel %vm30, %v1647, 0.0
  %1652 = vadd.xlane.f32.xlu0 %v1651
  %v1653 = vpop.xlane.xlu0 %1652
  %v1654 = vrcp.pop %v1650
  %v1655 = vrcp.pop %v1653
  %v1656 = vmul.f32 %v1645, %v1654
  %v1657 = vmul.f32 %v1647, %v1655
  %v1658 = vpack.c.bf16 %v1657, %v1656
  %1659 = vrot.lane.b32.xlu0 %v1564, 64
  %v1660 = vpop.permute.xlu0 %1659
  %v1663 = vsel %vm30, %v1658, 0
  %1665 = vmatprep.subr.bf16.mxu0 0
  %1666 = vmatpush1.bf16.msra.mxu0 0
  %1667 = vmatprep.subr.bf16.mxu0 0
  %1668 = vmatpush1.bf16.msra.mxu0 0
  %1669 = vmatprep.subr.bf16.mxu0 0
  %1670 = vmatpush1.bf16.msra.mxu0 0
  %1671 = vmatprep.subr.bf16.mxu0 0
  %1672 = vmatpush1.bf16.msra.mxu0 0
  %1673 = vmatprep.subr.bf16.mxu0 0
  %1674 = vmatpush1.bf16.msra.mxu0 0
  %1675 = vmatprep.subr.bf16.mxu0 0
  %1676 = vmatpush1.bf16.msra.mxu0 0
  %1677 = vmatprep.subr.bf16.mxu0 0
  %1678 = vmatpush1.bf16.msra.mxu0 0
  %1679 = vmatprep.subr.bf16.mxu0 0
  %1680 = vmatpush1.bf16.msra.mxu0 %v1660
  %1681 = vmatprep.subr.bf16.mxu0 0
  %1682 = vmatpush2.bf16.msra.mxu0 0
  %1683 = vmatprep.subr.bf16.mxu0 0
  %1684 = vmatpush2.bf16.msra.mxu0 0
  %1685 = vmatprep.subr.bf16.mxu0 0
  %1686 = vmatpush2.bf16.msra.mxu0 0
  %1687 = vmatprep.subr.bf16.mxu0 0
  %1688 = vmatpush2.bf16.msra.mxu0 0
  %1689 = vmatprep.subr.bf16.mxu0 0
  %1690 = vmatpush2.bf16.msra.mxu0 0
  %1691 = vmatprep.subr.bf16.mxu0 0
  %1692 = vmatpush2.bf16.msra.mxu0 0
  %1693 = vmatprep.subr.bf16.mxu0 0
  %1694 = vmatpush2.bf16.msra.mxu0 0
  %1695 = vmatprep.subr.bf16.mxu0 0
  %1696 = vmatpush2.bf16.msra.mxu0 0
  %1697 = vmatprep.mubr.bf16.mxu0 0
  %1698 = vmatmul.mubr.bf16.gmra.mxu0 %v1663
  %v1699 = vpop.f32.mrf.mxu0
  %v1700 = vadd.f32 0.0, %v1699
  %v1701 = vpop.f32.mrf.mxu0
  %v1702 = vpop.f32.mrf.mxu0
  %v1703 = vadd.f32 0.0, %v1702
  %v1704 = vpop.f32.mrf.mxu0
  %1705 = vdwg.mxu0
  %v1706 = vpack.c.bf16 %v1703, %v1700
  %v1707 = vld [vmem:[%s0 + $0x48] sm:$0xf]
  %v1708 = vld [vmem:[%s0 + $0x4c] sm:$0xf]
  %v1709 = vld [vmem:[%s0 + $0x50] sm:$0xf]
  %v1710 = vld [vmem:[%s0 + $0x54] sm:$0xf]
  %v1711 = vld [vmem:[%s1 + $0x11] sm:$0x1]
  %v1712 = vlaneseq
  %v1713 = vshrl.u32 %v1712, 7
  %v1714 = vsub.s32 0, %v1713
  %v1715 = vrot.slane %v1711, %v1714
  %v1720 = vunpack.c.l.b16 %v1707
  %v1721 = vunpack.c.l.b16 %v1708
  %v1722 = vunpack.c.l.b16 %v1709
  %v1723 = vunpack.c.l.b16 %v1710
  %v1724 = vpack.c.b16 %v1721, %v1720
  %v1725 = vpack.c.b16 %v1723, %v1722
  %v1729 = vsel %vm1410, %v1706, 0
  %1731 = vmatprep.subr.bf16.mxu0 0
  %1732 = vmatpush1.bf16.msra.mxu0 0
  %1733 = vmatprep.subr.bf16.mxu0 0
  %1734 = vmatpush1.bf16.msra.mxu0 0
  %1735 = vmatprep.subr.bf16.mxu0 0
  %1736 = vmatpush1.bf16.msra.mxu0 0
  %1737 = vmatprep.subr.bf16.mxu0 0
  %1738 = vmatpush1.bf16.msra.mxu0 0
  %1739 = vmatprep.subr.bf16.mxu0 0
  %1740 = vmatpush1.bf16.msra.mxu0 0
  %1741 = vmatprep.subr.bf16.mxu0 0
  %1742 = vmatpush1.bf16.msra.mxu0 0
  %1743 = vmatprep.subr.bf16.mxu0 0
  %1744 = vmatpush1.bf16.msra.mxu0 %v1725
  %1745 = vmatprep.subr.bf16.mxu0 0
  %1746 = vmatpush1.bf16.msra.mxu0 %v1724
  %1747 = vmatprep.subr.bf16.mxu0 0
  %1748 = vmatpush2.bf16.msra.mxu0 0
  %1749 = vmatprep.subr.bf16.mxu0 0
  %1750 = vmatpush2.bf16.msra.mxu0 0
  %1751 = vmatprep.subr.bf16.mxu0 0
  %1752 = vmatpush2.bf16.msra.mxu0 0
  %1753 = vmatprep.subr.bf16.mxu0 0
  %1754 = vmatpush2.bf16.msra.mxu0 0
  %1755 = vmatprep.subr.bf16.mxu0 0
  %1756 = vmatpush2.bf16.msra.mxu0 0
  %1757 = vmatprep.subr.bf16.mxu0 0
  %1758 = vmatpush2.bf16.msra.mxu0 0
  %1759 = vmatprep.subr.bf16.mxu0 0
  %1760 = vmatpush2.bf16.msra.mxu0 0
  %1761 = vmatprep.subr.bf16.mxu0 0
  %1762 = vmatpush2.bf16.msra.mxu0 0
  %1763 = vmatprep.mubr.bf16.mxu0 0
  %1764 = vmatmul.mubr.bf16.gmra.mxu0 %v1729
  %v1765 = vpop.f32.mrf.mxu0
  %v1766 = vadd.f32 %v1715, %v1765
  %v1767 = vpop.f32.mrf.mxu0
  %v1768 = vpop.f32.mrf.mxu0
  %v1769 = vadd.f32 %v1715, %v1768
  %v1770 = vpop.f32.mrf.mxu0
  %1771 = vdwg.mxu0
  %v1772 = vadd.f32 %v1496, %v1766
  %v1773 = vadd.f32 %v1497, %v1769
  %v1774 = vld [vmem:[%s1 + $0x12] sm:$0x1]
  %v1775 = vld [vmem:[%s1 + $0x13] sm:$0x1]
  %v1776 = vsel %vm1410, %v1772, 0.0
  %1777 = vadd.xlane.f32.xlu0 %v1776
  %v1778 = vpop.xlane.xlu0 %1777
  %v1779 = vsel %vm1410, %v1773, 0.0
  %1780 = vadd.xlane.f32.xlu0 %v1779
  %v1781 = vpop.xlane.xlu0 %1780
  %v1782 = vmul.f32 %v1778, %v1465
  %v1783 = vmul.f32 %v1781, %v1465
  %v1784 = vsub.f32 %v1772, %v1782
  %v1785 = vsub.f32 %v1773, %v1783
  %v1786 = vmul.f32 %v1784, %v1784
  %v1787 = vmul.f32 %v1785, %v1785
  %v1788 = vsel %vm1410, %v1786, 0.0
  %1789 = vadd.xlane.f32.xlu0 %v1788
  %v1790 = vpop.xlane.xlu0 %1789
  %v1791 = vsel %vm1410, %v1787, 0.0
  %1792 = vadd.xlane.f32.xlu0 %v1791
  %v1793 = vpop.xlane.xlu0 %1792
  %v1794 = vmul.f32 %v1790, %v1465
  %v1795 = vmul.f32 %v1793, %v1465
  %v1796 = vadd.f32 %v1794, 1e-12
  %v1797 = vadd.f32 %v1795, 1e-12
  %v1798 = vrsqrt.pop %v1796
  %v1799 = vrsqrt.pop %v1797
  %v1800 = vmul.f32 %v1784, %v1798
  %v1801 = vmul.f32 %v1785, %v1799
  %v1802 = vlaneseq
  %v1803 = vshrl.u32 %v1802, 7
  %v1804 = vsub.s32 0, %v1803
  %v1805 = vrot.slane %v1774, %v1804
  %v1806 = vmul.f32 %v1800, %v1805
  %v1807 = vmul.f32 %v1801, %v1805
  %v1808 = vlaneseq
  %v1809 = vshrl.u32 %v1808, 7
  %v1810 = vsub.s32 0, %v1809
  %v1811 = vrot.slane %v1775, %v1810
  %v1812 = vadd.f32 %v1806, %v1811
  %v1813 = vadd.f32 %v1807, %v1811
  %v1814 = vpack.c.bf16 %v1813, %v1812
  %v1815 = vld [vmem:[%s0 + $0x58] sm:$0xf]
  %v1816 = vld [vmem:[%s0 + $0x5c] sm:$0xf]
  %v1817 = vld [vmem:[%s0 + $0x60] sm:$0xf]
  %v1818 = vld [vmem:[%s0 + $0x64] sm:$0xf]
  %v1819 = vld [vmem:[%s1 + $0x14] sm:$0x1]
  %v1820 = vlaneseq
  %v1821 = vshrl.u32 %v1820, 7
  %v1822 = vsub.s32 0, %v1821
  %v1823 = vrot.slane %v1819, %v1822
  %v1828 = vunpack.c.l.b16 %v1815
  %v1829 = vunpack.c.l.b16 %v1816
  %v1830 = vunpack.c.l.b16 %v1817
  %v1831 = vunpack.c.l.b16 %v1818
  %v1832 = vpack.c.b16 %v1829, %v1828
  %v1833 = vpack.c.b16 %v1831, %v1830
  %v1837 = vsel %vm1410, %v1814, 0
  %1839 = vmatprep.subr.bf16.mxu0 0
  %1840 = vmatpush1.bf16.msra.mxu0 0
  %1841 = vmatprep.subr.bf16.mxu0 0
  %1842 = vmatpush1.bf16.msra.mxu0 0
  %1843 = vmatprep.subr.bf16.mxu0 0
  %1844 = vmatpush1.bf16.msra.mxu0 0
  %1845 = vmatprep.subr.bf16.mxu0 0
  %1846 = vmatpush1.bf16.msra.mxu0 0
  %1847 = vmatprep.subr.bf16.mxu0 0
  %1848 = vmatpush1.bf16.msra.mxu0 0
  %1849 = vmatprep.subr.bf16.mxu0 0
  %1850 = vmatpush1.bf16.msra.mxu0 0
  %1851 = vmatprep.subr.bf16.mxu0 0
  %1852 = vmatpush1.bf16.msra.mxu0 %v1833
  %1853 = vmatprep.subr.bf16.mxu0 0
  %1854 = vmatpush1.bf16.msra.mxu0 %v1832
  %1855 = vmatprep.subr.bf16.mxu0 0
  %1856 = vmatpush2.bf16.msra.mxu0 0
  %1857 = vmatprep.subr.bf16.mxu0 0
  %1858 = vmatpush2.bf16.msra.mxu0 0
  %1859 = vmatprep.subr.bf16.mxu0 0
  %1860 = vmatpush2.bf16.msra.mxu0 0
  %1861 = vmatprep.subr.bf16.mxu0 0
  %1862 = vmatpush2.bf16.msra.mxu0 0
  %1863 = vmatprep.subr.bf16.mxu0 0
  %1864 = vmatpush2.bf16.msra.mxu0 0
  %1865 = vmatprep.subr.bf16.mxu0 0
  %1866 = vmatpush2.bf16.msra.mxu0 0
  %1867 = vmatprep.subr.bf16.mxu0 0
  %1868 = vmatpush2.bf16.msra.mxu0 0
  %1869 = vmatprep.subr.bf16.mxu0 0
  %1870 = vmatpush2.bf16.msra.mxu0 0
  %1871 = vmatprep.mubr.bf16.mxu0 0
  %1872 = vmatmul.mubr.bf16.gmra.mxu0 %v1837
  %v1873 = vpop.f32.mrf.mxu0
  %v1874 = vadd.f32 %v1823, %v1873
  %v1875 = vpop.f32.mrf.mxu0
  %v1876 = vpop.f32.mrf.mxu0
  %v1877 = vadd.f32 %v1823, %v1876
  %v1878 = vpop.f32.mrf.mxu0
  %1879 = vdwg.mxu0
  %v1880 = vmul.f32 %v1874, 0.5
  %v1881 = vmul.f32 %v1877, 0.5
  %v1882 = vmul.f32 %v1874, 0.044715
  %v1883 = vmul.f32 %v1877, 0.044715
  %v1884 = vmul.f32 %v1882, %v1874
  %v1885 = vmul.f32 %v1883, %v1877
  %v1886 = vmul.f32 %v1884, %v1874
  %v1887 = vmul.f32 %v1885, %v1877
  %v1888 = vadd.f32 %v1874, %v1886
  %v1889 = vadd.f32 %v1877, %v1887
  %v1890 = vmul.f32 %v1888, 0.7978846
  %v1891 = vmul.f32 %v1889, 0.7978846
  %v1892 = vtanh.pop %v1890
  %v1893 = vtanh.pop %v1891
  %v1894 = vadd.f32 %v1892, 1.0
  %v1895 = vadd.f32 %v1893, 1.0
  %v1896 = vmul.f32 %v1880, %v1894
  %v1897 = vmul.f32 %v1881, %v1895
  %v1898 = vpack.c.bf16 %v1897, %v1896
  %v1899 = vld [vmem:[%s0 + $0x68] sm:$0xf]
  %v1900 = vld [vmem:[%s0 + $0x6c] sm:$0xf]
  %v1901 = vld [vmem:[%s0 + $0x70] sm:$0xf]
  %v1902 = vld [vmem:[%s0 + $0x74] sm:$0xf]
  %v1903 = vld [vmem:[%s0 + $0x78] sm:$0xf]
  %v1904 = vld [vmem:[%s0 + $0x7c] sm:$0xf]
  %v1905 = vld [vmem:[%s0 + $0x80] sm:$0xf]
  %v1906 = vld [vmem:[%s0 + $0x84] sm:$0xf]
  %v1907 = vld [vmem:[%s1 + $0x15] sm:$0x1]
  %v1908 = vlaneseq
  %v1909 = vshrl.u32 %v1908, 7
  %v1910 = vsub.s32 0, %v1909
  %v1911 = vrot.slane %v1907, %v1910
  %v1920 = vunpack.c.l.b16 %v1899
  %v1921 = vunpack.c.l.b16 %v1900
  %v1922 = vunpack.c.l.b16 %v1901
  %v1923 = vunpack.c.l.b16 %v1902
  %v1924 = vunpack.c.l.b16 %v1903
  %v1925 = vunpack.c.l.b16 %v1904
  %v1926 = vunpack.c.l.b16 %v1905
  %v1927 = vunpack.c.l.b16 %v1906
  %v1928 = vpack.c.b16 %v1921, %v1920
  %v1929 = vpack.c.b16 %v1923, %v1922
  %v1930 = vpack.c.b16 %v1925, %v1924
  %v1931 = vpack.c.b16 %v1927, %v1926
  %vm1936 = vcmask 523264
  %v1938 = vsel %vm1936, %v1898, 0
  %1940 = vmatprep.subr.bf16.mxu0 0
  %1941 = vmatpush1.bf16.msra.mxu0 0
  %1942 = vmatprep.subr.bf16.mxu0 0
  %1943 = vmatpush1.bf16.msra.mxu0 0
  %1944 = vmatprep.subr.bf16.mxu0 0
  %1945 = vmatpush1.bf16.msra.mxu0 0
  %1946 = vmatprep.subr.bf16.mxu0 0
  %1947 = vmatpush1.bf16.msra.mxu0 0
  %1948 = vmatprep.subr.bf16.mxu0 0
  %1949 = vmatpush1.bf16.msra.mxu0 %v1931
  %1950 = vmatprep.subr.bf16.mxu0 0
  %1951 = vmatpush1.bf16.msra.mxu0 %v1930
  %1952 = vmatprep.subr.bf16.mxu0 0
  %1953 = vmatpush1.bf16.msra.mxu0 %v1929
  %1954 = vmatprep.subr.bf16.mxu0 0
  %1955 = vmatpush1.bf16.msra.mxu0 %v1928
  %1956 = vmatprep.subr.bf16.mxu0 0
  %1957 = vmatpush2.bf16.msra.mxu0 0
  %1958 = vmatprep.subr.bf16.mxu0 0
  %1959 = vmatpush2.bf16.msra.mxu0 0
  %1960 = vmatprep.subr.bf16.mxu0 0
  %1961 = vmatpush2.bf16.msra.mxu0 0
  %1962 = vmatprep.subr.bf16.mxu0 0
  %1963 = vmatpush2.bf16.msra.mxu0 0
  %1964 = vmatprep.subr.bf16.mxu0 0
  %1965 = vmatpush2.bf16.msra.mxu0 0
  %1966 = vmatprep.subr.bf16.mxu0 0
  %1967 = vmatpush2.bf16.msra.mxu0 0
  %1968 = vmatprep.subr.bf16.mxu0 0
  %1969 = vmatpush2.bf16.msra.mxu0 0
  %1970 = vmatprep.subr.bf16.mxu0 0
  %1971 = vmatpush2.bf16.msra.mxu0 0
  %1972 = vmatprep.mubr.bf16.mxu0 0
  %1973 = vmatmul.mubr.bf16.gmra.mxu0 %v1938
  %v1974 = vpop.f32.mrf.mxu0
  %v1975 = vadd.f32 %v1911, %v1974
  %v1976 = vpop.f32.mrf.mxu0
  %v1977 = vpop.f32.mrf.mxu0
  %v1978 = vadd.f32 %v1911, %v1977
  %v1979 = vpop.f32.mrf.mxu0
  %1980 = vdwg.mxu0
  %v1981 = vadd.f32 %v1812, %v1975
  %v1982 = vadd.f32 %v1813, %v1978
  %v1983 = vld [vmem:[%s1 + $0x16] sm:$0x1]
  %v1984 = vld [vmem:[%s1 + $0x17] sm:$0x1]
  %v1985 = vsel %vm1410, %v1981, 0.0
  %1986 = vadd.xlane.f32.xlu0 %v1985
  %v1987 = vpop.xlane.xlu0 %1986
  %v1988 = vsel %vm1410, %v1982, 0.0
  %1989 = vadd.xlane.f32.xlu0 %v1988
  %v1990 = vpop.xlane.xlu0 %1989
  %v1991 = vmul.f32 %v1987, %v1465
  %v1992 = vmul.f32 %v1990, %v1465
  %v1993 = vsub.f32 %v1981, %v1991
  %v1994 = vsub.f32 %v1982, %v1992
  %v1995 = vmul.f32 %v1993, %v1993
  %v1996 = vmul.f32 %v1994, %v1994
  %v1997 = vsel %vm1410, %v1995, 0.0
  %1998 = vadd.xlane.f32.xlu0 %v1997
  %v1999 = vpop.xlane.xlu0 %1998
  %v2000 = vsel %vm1410, %v1996, 0.0
  %2001 = vadd.xlane.f32.xlu0 %v2000
  %v2002 = vpop.xlane.xlu0 %2001
  %v2003 = vmul.f32 %v1999, %v1465
  %v2004 = vmul.f32 %v2002, %v1465
  %v2005 = vadd.f32 %v2003, 1e-12
  %v2006 = vadd.f32 %v2004, 1e-12
  %v2007 = vrsqrt.pop %v2005
  %v2008 = vrsqrt.pop %v2006
  %v2009 = vmul.f32 %v1993, %v2007
  %v2010 = vmul.f32 %v1994, %v2008
  %v2011 = vlaneseq
  %v2012 = vshrl.u32 %v2011, 7
  %v2013 = vsub.s32 0, %v2012
  %v2014 = vrot.slane %v1983, %v2013
  %v2015 = vmul.f32 %v2009, %v2014
  %v2016 = vmul.f32 %v2010, %v2014
  %v2017 = vlaneseq
  %v2018 = vshrl.u32 %v2017, 7
  %v2019 = vsub.s32 0, %v2018
  %v2020 = vrot.slane %v1984, %v2019
  %v2021 = vadd.f32 %v2015, %v2020
  %v2022 = vadd.f32 %v2016, %v2020
  %2023 = vst.msk [vmem:[%s3 + $0x8] sm:$0xff] %vm1410, %v2021
  %2024 = vst.msk [vmem:[%s3 + $0x10] sm:$0xff] %vm1410, %v2022
  // Predicated region
  $region14: #{forward.1} parent=0 // pred_check
    _
  $region15: #{forward.1} parent=0 // pred_check_branch
    %2026 = sbr.rel (0) target = $region17
  $region16: #{forward.1} parent=0 // pred_region
    _
  $region17: #{forward.1} parent=0 // pred_fallthru
    _
  // Predicated region
  $region18: #{forward.1} parent=0 // pred_check
    _
  $region19: #{forward.1} parent=0 // pred_check_branch
    %2028 = sbr.rel (0) target = $region21
  $region20: #{forward.1} parent=0 // pred_region
    _
  $region21: #{forward.1} parent=0 // pred_fallthru
    _

</llo_original>
